<compile_context>
chip_gen: v5e
topology: v5e:2x2
jax: 0.10.0
libtpu: 0.0.40
codegen_flags: <defaults>
</compile_context>

<pallas_src>
import functools
import math

import jax
import jax.numpy as jnp
from jax.experimental import pallas as pl
from jax.experimental.pallas import tpu as pltpu

_MIN_KERNEL_SAMPLES = 4096              # below this, the pure-JAX fallback is faster
_INPUT_VMEM_BUDGET = 16 * 1024 * 1024   # bytes for the two double-buffered input blocks


def _num_tensorcores() -> int:
    """Best-effort TensorCores-per-device count (v4/v5p/v7x: 2; v5e/v6e: 1)."""
    try:
        kind = jax.devices()[0].device_kind.lower()
    except Exception:
        return 1
    if "v7" in kind or "v4" in kind or "v5p" in kind:
        return 2
    return 1


def _uw_stats_kernel(p_ref, t_ref, sq_ref, cnt_ref, *, n_inner, tile_r, valid_rows, has_tail):
    """Accumulate per-lane masked squared error and valid-sample counts.

    Grid = (num_par, n_inner). Outer axis: 'parallel' split across TensorCores. Inner axis:
    walks row blocks of the (R, W) view and is the reduction axis; the (1, 1, W) output blocks
    stay resident in VMEM across it (accumulator pattern), so no scratch and no epilogue copy.
    """
    par = pl.program_id(0)
    step = pl.program_id(1)

    @pl.when(step == 0)
    def _init():
        sq_ref[...] = jnp.zeros_like(sq_ref)
        cnt_ref[...] = jnp.zeros_like(cnt_ref)

    p = p_ref[...].astype(jnp.float32)
    t = t_ref[...].astype(jnp.float32)

    def _accumulate(valid):
        diff = p - t
        sq = jnp.where(valid, diff * diff, 0.0)        # single select keeps NaNs out
        cnt = valid.astype(jnp.float32)
        # In-register reduction over the sublane axis -> tiny (1, W) per-lane partials added
        # into the resident output blocks (no full-tile accumulators, no extra vst pressure).
        sq_ref[0] = sq_ref[0] + jnp.sum(sq, axis=0, keepdims=True)
        cnt_ref[0] = cnt_ref[0] + jnp.sum(cnt, axis=0, keepdims=True)

    if not has_tail:
        _accumulate(t == t)
    else:
        rows_left = valid_rows - (par * n_inner + step) * tile_r
        is_full = rows_left >= tile_r

        @pl.when(is_full)
        def _full_block():
            _accumulate(t == t)

        @pl.when(jnp.logical_not(is_full))
        def _tail_block():
            # Only the very last row block is ragged: rows past the array end hold undefined
            # VMEM contents and must be masked out.
            row_ids = jax.lax.broadcasted_iota(jnp.int32, p.shape, 0)
            _accumulate(jnp.logical_and(t == t, row_ids < rows_left))


def _masked_sq_stats(p2, t2, ny):
    """p2, t2: (R, W) with W % ny == 0 and variable id == lane % ny.

    Returns per-variable (sum of squared error, valid count), each shape (ny,), float32.
    """
    R, W = p2.shape
    itemsize = max(int(p2.dtype.itemsize), int(t2.dtype.itemsize))

    # Biggest row tile that keeps the 2 double-buffered input blocks under the VMEM budget
    # (the accumulators are only a few KiB). tile_r is a multiple of 8 and never exceeds R,
    # so only the final block can be ragged.
    rows_budget = max(8, (_INPUT_VMEM_BUDGET // (W * itemsize * 2 * 2)) // 8 * 8)
    tile_r = int(max(8, min(rows_budget, (R // 8) * 8)))
    n_blocks = -(-R // tile_r)
    has_tail = (R % tile_r) != 0

    # Megacore split only when the chip has 2 TensorCores and the blocks split evenly into
    # several steps per core — never round the grid up with all-padding tiles.
    if _num_tensorcores() >= 2 and n_blocks >= 4 and n_blocks % 2 == 0:
        num_par = 2
    else:
        num_par = 1
    n_inner = n_blocks // num_par

    kernel = functools.partial(
        _uw_stats_kernel, n_inner=n_inner, tile_r=tile_r, valid_rows=R, has_tail=has_tail)

    in_map = lambda par, i: (par * n_inner + i, 0)
    out_map = lambda par, i: (par, 0, 0)

    sq_slab, cnt_slab = pl.pallas_call(
        kernel,
        out_shape=(jax.ShapeDtypeStruct((num_par, 1, W), jnp.float32),
                   jax.ShapeDtypeStruct((num_par, 1, W), jnp.float32)),
        grid_spec=pltpu.PrefetchScalarGridSpec(
            num_scalar_prefetch=0,
            grid=(num_par, n_inner),
            in_specs=[pl.BlockSpec((tile_r, W), in_map),
                      pl.BlockSpec((tile_r, W), in_map)],
            # TODO(synk): on v7x, add pipeline_mode=pl.Buffered(3) to the input specs if an
            # xprof trace shows exposed DMA at step boundaries.
            out_specs=(pl.BlockSpec((1, 1, W), out_map),
                       pl.BlockSpec((1, 1, W), out_map)),
        ),
        compiler_params=pltpu.CompilerParams(
            dimension_semantics=("parallel", "arbitrary"),
            vmem_limit_bytes=32 * 1024 * 1024,
        ),
    )(p2, t2)

    # Tiny epilogue in plain JAX: merge parallel slabs, then fold lanes -> variables
    # (lane c holds variable c % ny because W % ny == 0).
    sq_col = jnp.sum(sq_slab, axis=(0, 1))      # (W,)
    cnt_col = jnp.sum(cnt_slab, axis=(0, 1))    # (W,)
    sum_sq = jnp.sum(sq_col.reshape(W // ny, ny), axis=0)
    count = jnp.sum(cnt_col.reshape(W // ny, ny), axis=0)
    return sum_sq, count


def uncertainty_weights_loss(output, target, log_vars, loss_funcs="rmse",
                             data_gap=None, limit_part=None):
    """Pallas implementation of UncertaintyWeights.forward (no-gap path).

    output: (T, B, ny) predictions; target: (T, B, ny) with NaNs marking missing observations;
    log_vars: (ny,) uncertainty log-variances; loss_funcs: 'mse'/'rmse' or a list of them.
    Note: a variable with zero valid targets yields NaN (0/0), matching the PyTorch module.
    """
    T, B, _ = output.shape
    ny = target.shape[-1]
    n = T * B

    if data_gap is None:
        data_gap = [0] * ny
    if any(int(g) > 0 for g in data_gap):
        # TODO(synk): deal_gap_data (data_gap>0) needs data-dependent, variable-length segment
        # reductions (cumsum over NaN runs + scatter_add); no clean static-shape Pallas path.
        raise NotImplementedError("data_gap > 0 (deal_gap_data) is not supported")

    if n < _MIN_KERNEL_SAMPLES:
        # Small-problem fallback: kernel launch / layout overhead dwarfs the reduction.
        p0 = output.reshape(n, ny).astype(jnp.float32)
        t0 = target.reshape(n, ny).astype(jnp.float32)
        valid = t0 == t0
        diff = p0 - t0
        sum_sq = jnp.sum(jnp.where(valid, diff * diff, 0.0), axis=0)
        count = jnp.sum(valid.astype(jnp.float32), axis=0)
    else:
        # Native flat order: element g of (T,B,ny).reshape(-1) belongs to variable g % ny.
        # W is a multiple of both 128 (lane width) and ny, so after the (R, W) reshape every
        # lane holds a single, statically known variable. No transpose pass; the NaN pad is
        # emitted only when T*B*ny is not already a multiple of W.
        W = math.lcm(128, ny)
        total = n * ny
        pad = (-total) % W
        p_flat = output.reshape(-1)
        t_flat = target.reshape(-1)
        if pad:
            p_flat = jnp.pad(p_flat, (0, pad))
            t_flat = jnp.pad(t_flat, (0, pad), constant_values=float("nan"))
        R = (total + pad) // W
        sum_sq, count = _masked_sq_stats(p_flat.reshape(R, W), t_flat.reshape(R, W), ny)

    mse = sum_sq / count   # NaN if a variable has no valid targets (matches PyTorch behavior)

    # TODO(synk): arbitrary torch.nn loss_funcs modules are not translatable; only the
    # analytic 'mse' / 'rmse' losses are supported here.
    names = [loss_funcs] * ny if isinstance(loss_funcs, str) else list(loss_funcs)
    loss_k = []
    for k in range(ny):
        if names[k] == "mse":
            loss_k.append(mse[k])
        elif names[k] == "rmse":
            loss_k.append(jnp.sqrt(mse[k]))
        else:
            raise NotImplementedError(f"unsupported loss: {names[k]}")
    loss_k = jnp.stack(loss_k)

    log_vars = jnp.asarray(log_vars, jnp.float32)
    weighted = jnp.exp(-log_vars) * loss_k + log_vars        # precision * loss_k + log_var
    include = jnp.asarray(
        [0.0 if (limit_part is not None and k in limit_part) else 1.0 for k in range(ny)],
        jnp.float32,
    )
    return jnp.sum(jnp.where(include > 0, weighted, 0.0))


def _reference_uncertainty_weights(output, target, log_vars, loss_funcs="rmse",
                                   limit_part=None):
    """Pure-JAX reference matching the PyTorch forward (NaN-masked per-variable loss)."""
    ny = target.shape[-1]
    names = [loss_funcs] * ny if isinstance(loss_funcs, str) else list(loss_funcs)
    total = jnp.float32(0.0)
    for k in range(ny):
        if limit_part is not None and k in limit_part:
            continue
        p0 = output[:, :, k].astype(jnp.float32)
        t0 = target[:, :, k].astype(jnp.float32)
        m = t0 == t0
        cnt = jnp.sum(m.astype(jnp.float32))
        sq = jnp.sum(jnp.where(m, (p0 - jnp.where(m, t0, 0.0)) ** 2, 0.0))
        mse = sq / cnt
        lk = jnp.sqrt(mse) if names[k] == "rmse" else mse
        total = total + jnp.exp(-log_vars[k]) * lk + log_vars[k]
    return total


if __name__ == "__main__":
    key = jax.random.PRNGKey(0)

    # Case 1: small shapes implied by the forward (seq=8, batch=2, n_out=2) — fallback path.
    T, B, ny = 8, 2, 2
    k1, k2, k3, k4 = jax.random.split(key, 4)
    output = jax.random.normal(k1, (T, B, ny), dtype=jnp.float32)
    target = jax.random.normal(k2, (T, B, ny), dtype=jnp.float32)
    target = jnp.where(jax.random.bernoulli(k3, 0.2, (T, B, ny)), jnp.nan, target)
    log_vars = jnp.array([0.1, -0.3], dtype=jnp.float32)
    res = uncertainty_weights_loss(output, target, log_vars, loss_funcs="rmse",
                                   data_gap=[0, 0])
    jax.block_until_ready(res)
    ref = _reference_uncertainty_weights(output, target, log_vars, "rmse")
    assert jnp.allclose(res, ref, rtol=1e-5, atol=1e-5), (res, ref)

    # Case 2: kernel path. T*B*ny = 57600 is divisible by W = 384 -> zero wrapper pad passes;
    # exercises the ragged last row block, per-variable loss list, and limit_part.
    T2, B2, ny2 = 300, 64, 3
    k5, k6, k7, k8 = jax.random.split(k4, 4)
    output2 = jax.random.normal(k5, (T2, B2, ny2), dtype=jnp.float32)
    target2 = jax.random.normal(k6, (T2, B2, ny2), dtype=jnp.float32)
    target2 = jnp.where(jax.random.bernoulli(k7, 0.15, (T2, B2, ny2)), jnp.nan, target2)
    log_vars2 = jnp.array([0.2, -0.1, 0.4], dtype=jnp.float32)
    loss_list = ["rmse", "mse", "rmse"]
    res2 = uncertainty_weights_loss(output2, target2, log_vars2, loss_funcs=loss_list,
                                    data_gap=[0, 0, 0], limit_part=[2])
    jax.block_until_ready(res2)
    ref2 = _reference_uncertainty_weights(output2, target2, log_vars2, loss_list, [2])
    assert jnp.allclose(res2, ref2, rtol=1e-4, atol=1e-4), (res2, ref2)

    # Case 3: kernel path where T*B*ny is NOT a multiple of W (exercises the NaN tail pad and
    # a multi-step grid with a ragged last block).
    T3, B3, ny3 = 250, 33, 2
    k9, k10, k11 = jax.random.split(k8, 3)
    output3 = jax.random.normal(k9, (T3, B3, ny3), dtype=jnp.float32)
    target3 = jax.random.normal(k10, (T3, B3, ny3), dtype=jnp.float32)
    target3 = jnp.where(jax.random.bernoulli(k11, 0.3, (T3, B3, ny3)), jnp.nan, target3)
    log_vars3 = jnp.array([0.05, -0.2], dtype=jnp.float32)
    res3 = uncertainty_weights_loss(output3, target3, log_vars3, loss_funcs="mse",
                                    data_gap=[0, 0])
    jax.block_until_ready(res3)
    ref3 = _reference_uncertainty_weights(output3, target3, log_vars3, "mse")
    assert jnp.allclose(res3, ref3, rtol=1e-4, atol=1e-4), (res3, ref3)

    print("KERNEL_OK")
</pallas_src>

<mosaic_0001>
module attributes {stable_mosaic.version = 11 : i64} {
  func.func @_uw_stats_kernel(%arg0: i32, %arg1: i32, %arg2: memref<144x384xf32, #tpu.memory_space<vmem>>, %arg3: memref<144x384xf32, #tpu.memory_space<vmem>>, %arg4: memref<1x1x384xf32, #tpu.memory_space<vmem>>, %arg5: memref<1x1x384xf32, #tpu.memory_space<vmem>>) attributes {dimension_semantics = [#tpu.dimension_semantics<parallel>, #tpu.dimension_semantics<arbitrary>], iteration_bounds = array<i64: 1, 2>, scalar_prefetch = 0 : i64, scratch_operands = 0 : i64, tpu.core_type = #tpu.core_type<tc>, window_params = [{transform_indices = @transform_0, window_bounds = array<i64: 144, 384>}, {transform_indices = @transform_1, window_bounds = array<i64: 144, 384>}, {transform_indices = @transform_2, window_bounds = array<i64: 1, 1, 384>}, {transform_indices = @transform_3, window_bounds = array<i64: 1, 1, 384>}]} {
    %c0_i32 = arith.constant 0 : i32
    %0 = arith.cmpi eq, %arg1, %c0_i32 : i32
    %1 = arith.extui %0 : i1 to i32
    %c0_i32_0 = arith.constant 0 : i32
    %2 = arith.cmpi ne, %1, %c0_i32_0 : i32
    scf.if %2 {
      %cst = arith.constant 0.000000e+00 : f32
      %15 = vector.broadcast %cst : f32 to vector<1x1x384xf32>
      %c0_7 = arith.constant 0 : index
      %c0_8 = arith.constant 0 : index
      %c0_9 = arith.constant 0 : index
      %16 = vector.load %arg4[%c0_7, %c0_8, %c0_9] : memref<1x1x384xf32, #tpu.memory_space<vmem>>, vector<1x1x384xf32>
      tpu.vector_store %arg4[%c0_7, %c0_8, %c0_9], %15 {strides = array<i32>} : memref<1x1x384xf32, #tpu.memory_space<vmem>>, vector<1x1x384xf32>,
      %cst_10 = arith.constant 0.000000e+00 : f32
      %17 = vector.broadcast %cst_10 : f32 to vector<1x1x384xf32>
      %c0_11 = arith.constant 0 : index
      %c0_12 = arith.constant 0 : index
      %c0_13 = arith.constant 0 : index
      %18 = vector.load %arg5[%c0_11, %c0_12, %c0_13] : memref<1x1x384xf32, #tpu.memory_space<vmem>>, vector<1x1x384xf32>
      tpu.vector_store %arg5[%c0_11, %c0_12, %c0_13], %17 {strides = array<i32>} : memref<1x1x384xf32, #tpu.memory_space<vmem>>, vector<1x1x384xf32>,
    } else {
    }
    %c0 = arith.constant 0 : index
    %c0_1 = arith.constant 0 : index
    %3 = vector.load %arg2[%c0, %c0_1] : memref<144x384xf32, #tpu.memory_space<vmem>>, vector<144x384xf32>
    %c0_2 = arith.constant 0 : index
    %c0_3 = arith.constant 0 : index
    %4 = vector.load %arg3[%c0_2, %c0_3] : memref<144x384xf32, #tpu.memory_space<vmem>>, vector<144x384xf32>
    %c2_i32 = arith.constant 2 : i32
    %5 = arith.muli %arg0, %c2_i32 : i32
    %6 = arith.addi %5, %arg1 : i32
    %c144_i32 = arith.constant 144 : i32
    %7 = arith.muli %6, %c144_i32 : i32
    %c150_i32 = arith.constant 150 : i32
    %8 = arith.subi %c150_i32, %7 : i32
    %c144_i32_4 = arith.constant 144 : i32
    %9 = arith.cmpi sge, %8, %c144_i32_4 : i32
    %10 = arith.extui %9 : i1 to i32
    %c0_i32_5 = arith.constant 0 : i32
    %11 = arith.cmpi ne, %10, %c0_i32_5 : i32
    scf.if %11 {
      %15 = arith.cmpf oeq, %4, %4 : vector<144x384xf32>
      %16 = arith.subf %3, %4 : vector<144x384xf32>
      %17 = arith.mulf %16, %16 : vector<144x384xf32>
      %cst = arith.constant 0.000000e+00 : f32
      %18 = vector.broadcast %cst : f32 to vector<144x384xf32>
      %19 = arith.select %15, %17, %18 : vector<144x384xi1>, vector<144x384xf32>
      %20 = arith.extui %15 : vector<144x384xi1> to vector<144x384xi32>
      %21 = arith.sitofp %20 : vector<144x384xi32> to vector<144x384xf32>
      %c0_7 = arith.constant 0 : index
      %c0_8 = arith.constant 0 : index
      %c0_9 = arith.constant 0 : index
      %22 = vector.load %arg4[%c0_7, %c0_8, %c0_9] : memref<1x1x384xf32, #tpu.memory_space<vmem>>, vector<1x1x384xf32>
      %23 = vector.shape_cast %22 : vector<1x1x384xf32> to vector<1x384xf32>
      %cst_10 = arith.constant dense<0.000000e+00> : vector<384xf32>
      %24 = vector.multi_reduction <add>, %19, %cst_10 [0] : vector<144x384xf32> to vector<384xf32>
      %25 = vector.shape_cast %24 : vector<384xf32> to vector<1x384xf32>
      %26 = arith.addf %23, %25 : vector<1x384xf32>
      %c0_11 = arith.constant 0 : index
      %c0_12 = arith.constant 0 : index
      %c0_13 = arith.constant 0 : index
      %27 = vector.load %arg4[%c0_11, %c0_12, %c0_13] : memref<1x1x384xf32, #tpu.memory_space<vmem>>, vector<1x1x384xf32>
      %28 = vector.shape_cast %27 : vector<1x1x384xf32> to vector<1x384xf32>
      %29 = vector.shape_cast %26 : vector<1x384xf32> to vector<1x1x384xf32>
      tpu.vector_store %arg4[%c0_11, %c0_12, %c0_13], %29 {strides = array<i32>} : memref<1x1x384xf32, #tpu.memory_space<vmem>>, vector<1x1x384xf32>,
      %c0_14 = arith.constant 0 : index
      %c0_15 = arith.constant 0 : index
      %c0_16 = arith.constant 0 : index
      %30 = vector.load %arg5[%c0_14, %c0_15, %c0_16] : memref<1x1x384xf32, #tpu.memory_space<vmem>>, vector<1x1x384xf32>
      %31 = vector.shape_cast %30 : vector<1x1x384xf32> to vector<1x384xf32>
      %cst_17 = arith.constant dense<0.000000e+00> : vector<384xf32>
      %32 = vector.multi_reduction <add>, %21, %cst_17 [0] : vector<144x384xf32> to vector<384xf32>
      %33 = vector.shape_cast %32 : vector<384xf32> to vector<1x384xf32>
      %34 = arith.addf %31, %33 : vector<1x384xf32>
      %c0_18 = arith.constant 0 : index
      %c0_19 = arith.constant 0 : index
      %c0_20 = arith.constant 0 : index
      %35 = vector.load %arg5[%c0_18, %c0_19, %c0_20] : memref<1x1x384xf32, #tpu.memory_space<vmem>>, vector<1x1x384xf32>
      %36 = vector.shape_cast %35 : vector<1x1x384xf32> to vector<1x384xf32>
      %37 = vector.shape_cast %34 : vector<1x384xf32> to vector<1x1x384xf32>
      tpu.vector_store %arg5[%c0_18, %c0_19, %c0_20], %37 {strides = array<i32>} : memref<1x1x384xf32, #tpu.memory_space<vmem>>, vector<1x1x384xf32>,
    } else {
    }
    %true = arith.constant true
    %12 = arith.xori %9, %true : i1
    %13 = arith.extui %12 : i1 to i32
    %c0_i32_6 = arith.constant 0 : i32
    %14 = arith.cmpi ne, %13, %c0_i32_6 : i32
    scf.if %14 {
      %15 = tpu.iota {dimensions = array<i32: 0>} : vector<144x384xi32>
      %16 = arith.cmpf oeq, %4, %4 : vector<144x384xf32>
      %17 = vector.broadcast %8 : i32 to vector<144x384xi32>
      %18 = arith.cmpi slt, %15, %17 : vector<144x384xi32>
      %19 = arith.andi %16, %18 : vector<144x384xi1>
      %20 = arith.subf %3, %4 : vector<144x384xf32>
      %21 = arith.mulf %20, %20 : vector<144x384xf32>
      %cst = arith.constant 0.000000e+00 : f32
      %22 = vector.broadcast %cst : f32 to vector<144x384xf32>
      %23 = arith.select %19, %21, %22 : vector<144x384xi1>, vector<144x384xf32>
      %24 = arith.extui %19 : vector<144x384xi1> to vector<144x384xi32>
      %25 = arith.sitofp %24 : vector<144x384xi32> to vector<144x384xf32>
      %c0_7 = arith.constant 0 : index
      %c0_8 = arith.constant 0 : index
      %c0_9 = arith.constant 0 : index
      %26 = vector.load %arg4[%c0_7, %c0_8, %c0_9] : memref<1x1x384xf32, #tpu.memory_space<vmem>>, vector<1x1x384xf32>
      %27 = vector.shape_cast %26 : vector<1x1x384xf32> to vector<1x384xf32>
      %cst_10 = arith.constant dense<0.000000e+00> : vector<384xf32>
      %28 = vector.multi_reduction <add>, %23, %cst_10 [0] : vector<144x384xf32> to vector<384xf32>
      %29 = vector.shape_cast %28 : vector<384xf32> to vector<1x384xf32>
      %30 = arith.addf %27, %29 : vector<1x384xf32>
      %c0_11 = arith.constant 0 : index
      %c0_12 = arith.constant 0 : index
      %c0_13 = arith.constant 0 : index
      %31 = vector.load %arg4[%c0_11, %c0_12, %c0_13] : memref<1x1x384xf32, #tpu.memory_space<vmem>>, vector<1x1x384xf32>
      %32 = vector.shape_cast %31 : vector<1x1x384xf32> to vector<1x384xf32>
      %33 = vector.shape_cast %30 : vector<1x384xf32> to vector<1x1x384xf32>
      tpu.vector_store %arg4[%c0_11, %c0_12, %c0_13], %33 {strides = array<i32>} : memref<1x1x384xf32, #tpu.memory_space<vmem>>, vector<1x1x384xf32>,
      %c0_14 = arith.constant 0 : index
      %c0_15 = arith.constant 0 : index
      %c0_16 = arith.constant 0 : index
      %34 = vector.load %arg5[%c0_14, %c0_15, %c0_16] : memref<1x1x384xf32, #tpu.memory_space<vmem>>, vector<1x1x384xf32>
      %35 = vector.shape_cast %34 : vector<1x1x384xf32> to vector<1x384xf32>
      %cst_17 = arith.constant dense<0.000000e+00> : vector<384xf32>
      %36 = vector.multi_reduction <add>, %25, %cst_17 [0] : vector<144x384xf32> to vector<384xf32>
      %37 = vector.shape_cast %36 : vector<384xf32> to vector<1x384xf32>
      %38 = arith.addf %35, %37 : vector<1x384xf32>
      %c0_18 = arith.constant 0 : index
      %c0_19 = arith.constant 0 : index
      %c0_20 = arith.constant 0 : index
      %39 = vector.load %arg5[%c0_18, %c0_19, %c0_20] : memref<1x1x384xf32, #tpu.memory_space<vmem>>, vector<1x1x384xf32>
      %40 = vector.shape_cast %39 : vector<1x1x384xf32> to vector<1x384xf32>
      %41 = vector.shape_cast %38 : vector<1x384xf32> to vector<1x1x384xf32>
      tpu.vector_store %arg5[%c0_18, %c0_19, %c0_20], %41 {strides = array<i32>} : memref<1x1x384xf32, #tpu.memory_space<vmem>>, vector<1x1x384xf32>,
    } else {
    }
    return
  }
  func.func @transform_0(%arg0: i32, %arg1: i32) -> (i32, i32) {
    %c2_i32 = arith.constant 2 : i32
    %0 = arith.muli %arg0, %c2_i32 : i32
    %1 = arith.addi %0, %arg1 : i32
    %c0_i32 = arith.constant 0 : i32
    %c0_i32_0 = arith.constant 0 : i32
    return %1, %c0_i32 : i32, i32
  }
  func.func @transform_1(%arg0: i32, %arg1: i32) -> (i32, i32) {
    %c2_i32 = arith.constant 2 : i32
    %0 = arith.muli %arg0, %c2_i32 : i32
    %1 = arith.addi %0, %arg1 : i32
    %c0_i32 = arith.constant 0 : i32
    %c0_i32_0 = arith.constant 0 : i32
    return %1, %c0_i32 : i32, i32
  }
  func.func @transform_2(%arg0: i32, %arg1: i32) -> (i32, i32, i32) {
    %c0_i32 = arith.constant 0 : i32
    %c0_i32_0 = arith.constant 0 : i32
    %c0_i32_1 = arith.constant 0 : i32
    return %arg0, %c0_i32, %c0_i32_0 : i32, i32, i32
  }
  func.func @transform_3(%arg0: i32, %arg1: i32) -> (i32, i32, i32) {
    %c0_i32 = arith.constant 0 : i32
    %c0_i32_0 = arith.constant 0 : i32
    %c0_i32_1 = arith.constant 0 : i32
    return %arg0, %c0_i32, %c0_i32_0 : i32, i32, i32
  }
}

</mosaic_0001>

<llo_original>
// kernel: tpu_custom_call.1
$region0: #{tpu_custom_call.1}
  #allocation0 [shape = 'u32[]', space=smem, size = 0x4, offset = 0x4, fixed_abs, tag = 'smem constant byte address 0x4 - core index']
  #allocation1 [shape = 'u32[72,128]{1,0:T(1,128)}', space=vmem, size = 0x9000, scoped, tag = 'internal scratch']
  %s0 = inlined_call_operand.hbm [shape: f32[150,384], index: 0, kind: input, shape index: {}]
  %s1 = inlined_call_operand.hbm [shape: f32[150,384], index: 1, kind: input, shape index: {}]
  %s2 = inlined_call_operand.hbm [shape: f32[1,1,384], index: 2, kind: output, shape index: {0}]
  %s3 = inlined_call_operand.hbm [shape: f32[1,1,384], index: 3, kind: output, shape index: {1}]
  %4 = xla_tuple %s2, %s3
  %s5 = sld [smem:[#allocation0]]
  $region69: #{tpu_custom_call.1} parent=0
    _
  %s7 = ssub.s32 1, %s5
  %s8 = scalar_select 0, %s7, %s5
  $region1: #{tpu_custom_call.1} parent=0
    #allocation2 [shape = 'u8[442368]{0}', space=vmem, size = 0x6c000, scoped, tag = 'input window, operand 0']
    #allocation3 [shape = 's32[2]{0}', space=sflag, size = 0x8, scoped, tag = 'scoped memory for tpu_custom_call.1']
    #allocation4 [shape = 's32[2]{0}', space=sflag, size = 0x8, scoped, tag = 'scoped memory for tpu_custom_call.1']
    #allocation5 [shape = 'u8[442368]{0}', space=vmem, size = 0x6c000, scoped, tag = 'input window, operand 1']
    #allocation6 [shape = 's32[2]{0}', space=sflag, size = 0x8, scoped, tag = 'scoped memory for tpu_custom_call.1']
    #allocation7 [shape = 'u8[1536]{0}', space=vmem, size = 0x800, scoped, tag = 'output window, operand 0, single buffered']
    #allocation8 [shape = 'u8[1536]{0}', space=vmem, size = 0x800, scoped, tag = 'output window, operand 1, single buffered']
    #allocation9 [shape = 's32[1]{0}', space=sflag, size = 0x4, scoped, tag = 'scoped memory for tpu_custom_call.1']
    %9 = vsyncpa [#allocation3], 0
    %s10 = scalar_lea.sflag [#allocation3], 1
    %11 = vsyncpa %s10, 0
    %12 = vsyncpa [#allocation6], 0
    %s13 = scalar_lea.sflag [#allocation6], 1
    %14 = vsyncpa %s13, 0
    %15 = vsyncpa [#allocation4], 0
    %16 = vsyncpa [#allocation9], 0
    loop: start=0, step=1, limit=4
    $region2: #{tpu_custom_call.1} parent=1 // loop_pre_header
      _
    $region3: #{tpu_custom_call.1} parent=1 // loop_header
      %s18 = sphi 0, %s22
      %p19 = scmp.ge.s32.totalorder %s18, 4
      %s25 = sphi 0, %s37
      %s26 = sphi 0, %s33
      %s27 = sphi 0, %s25
      %s28 = sphi 0, %s26
      %s29 = sphi 0, %s27
      %s30 = sphi 0, %s28
      %s44 = sphi 0, %s46
      %s47 = sphi 0, %s44
      %s48 = sphi 0, %s47
      %s64 = sphi 0, %s48
      %s74 = sphi 0, %s76
      %s77 = sphi 0, %s74
      %s78 = sphi 0, %s77
      %s94 = sphi 0, %s78
      %s100 = sphi 0, %s102
      %s103 = sphi 0, %s100
      %s104 = sphi 0, %s103
      %s120 = sphi 0, %s104
      %s126 = sphi 0, %s128
      %s129 = sphi 0, %s126
      %s130 = sphi 0, %s129
      %s146 = sphi 0, %s130
    $region4: #{tpu_custom_call.1} parent=1 // loop_header_branch
      %21 = sbr.rel (%p19) target = $region8
    $region5: #{tpu_custom_call.1} parent=1 // loop_body
      %s23 = ssub.s32 %s18, 1
      %s24 = ssub.s32 %s18, 2
      %s31 = sadd.s32 1, %s26
      %p32 = scmp.ge.s32.totalorder %s31, 2
      %s33 = scalar_select %p32, 0, %s31
      %s34 = sadd.s32 1, %s25
      %s35 = scalar_select %p32, %s34, %s25
      %p36 = scmp.ge.s32.totalorder %s35, 1
      %s37 = scalar_select %p36, 0, %s35
      %s38 = smul.u32 %s25, 2
      %s39 = sadd.s32 %s38, %s26
      %s40 = smul.u32 %s37, 2
      %s41 = sadd.s32 %s40, %s33
      %s42 = ssub.s32 %s39, %s41
      %p43 = scmp.eq.s32.totalorder %s42, 0
      %s45 = sadd.s32 %s44, 1
      %s46 = scalar_select %p43, %s44, %s45
      %p49 = pneg %p43
      %p50 = scmp.eq.s32.totalorder %s18, 1
      %p51 = por %p49, %p50
      %p52 = scmp.ne.s32.totalorder %s44, %s47
      %p53 = scmp.eq.s32.totalorder %s18, 0
      %p54 = por %p52, %p53
      %p55 = scmp.ne.s32.totalorder %s44, %s47
      %p56 = scmp.eq.s32.totalorder %s23, 1
      %p57 = por %p55, %p56
      %p58 = scmp.ne.s32.totalorder %s47, %s48
      %p59 = scmp.eq.s32.totalorder %s23, 0
      %p60 = por %p58, %p59
      %p61 = scmp.ne.s32.totalorder %s47, %s48
      %p62 = scmp.eq.s32.totalorder %s24, 1
      %p63 = por %p61, %p62
      %p65 = scmp.ne.s32.totalorder %s48, %s64
      %p66 = scmp.eq.s32.totalorder %s24, 0
      %p67 = por %p65, %p66
      %s68 = smul.u32 %s25, 2
      %s69 = sadd.s32 %s68, %s26
      %s70 = smul.u32 %s37, 2
      %s71 = sadd.s32 %s70, %s33
      %s72 = ssub.s32 %s69, %s71
      %p73 = scmp.eq.s32.totalorder %s72, 0
      %s75 = sadd.s32 %s74, 1
      %s76 = scalar_select %p73, %s74, %s75
      %p79 = pneg %p73
      %p80 = scmp.eq.s32.totalorder %s18, 1
      %p81 = por %p79, %p80
      %p82 = scmp.ne.s32.totalorder %s74, %s77
      %p83 = scmp.eq.s32.totalorder %s18, 0
      %p84 = por %p82, %p83
      %p85 = scmp.ne.s32.totalorder %s74, %s77
      %p86 = scmp.eq.s32.totalorder %s23, 1
      %p87 = por %p85, %p86
      %p88 = scmp.ne.s32.totalorder %s77, %s78
      %p89 = scmp.eq.s32.totalorder %s23, 0
      %p90 = por %p88, %p89
      %p91 = scmp.ne.s32.totalorder %s77, %s78
      %p92 = scmp.eq.s32.totalorder %s24, 1
      %p93 = por %p91, %p92
      %p95 = scmp.ne.s32.totalorder %s78, %s94
      %p96 = scmp.eq.s32.totalorder %s24, 0
      %p97 = por %p95, %p96
      %s98 = ssub.s32 %s25, %s37
      %p99 = scmp.eq.s32.totalorder %s98, 0
      %s101 = sadd.s32 %s100, 1
      %s102 = scalar_select %p99, %s100, %s101
      %p105 = pneg %p99
      %p106 = scmp.eq.s32.totalorder %s18, 1
      %p107 = por %p105, %p106
      %p108 = scmp.ne.s32.totalorder %s100, %s103
      %p109 = scmp.eq.s32.totalorder %s18, 0
      %p110 = por %p108, %p109
      %p111 = scmp.ne.s32.totalorder %s100, %s103
      %p112 = scmp.eq.s32.totalorder %s23, 1
      %p113 = por %p111, %p112
      %p114 = scmp.ne.s32.totalorder %s103, %s104
      %p115 = scmp.eq.s32.totalorder %s23, 0
      %p116 = por %p114, %p115
      %p117 = scmp.ne.s32.totalorder %s103, %s104
      %p118 = scmp.eq.s32.totalorder %s24, 1
      %p119 = por %p117, %p118
      %p121 = scmp.ne.s32.totalorder %s104, %s120
      %p122 = scmp.eq.s32.totalorder %s24, 0
      %p123 = por %p121, %p122
      %s124 = ssub.s32 %s25, %s37
      %p125 = scmp.eq.s32.totalorder %s124, 0
      %s127 = sadd.s32 %s126, 1
      %s128 = scalar_select %p125, %s126, %s127
      %p131 = pneg %p125
      %p132 = scmp.eq.s32.totalorder %s18, 1
      %p133 = por %p131, %p132
      %p134 = scmp.ne.s32.totalorder %s126, %s129
      %p135 = scmp.eq.s32.totalorder %s18, 0
      %p136 = por %p134, %p135
      %p137 = scmp.ne.s32.totalorder %s126, %s129
      %p138 = scmp.eq.s32.totalorder %s23, 1
      %p139 = por %p137, %p138
      %p140 = scmp.ne.s32.totalorder %s129, %s130
      %p141 = scmp.eq.s32.totalorder %s23, 0
      %p142 = por %p140, %p141
      %p143 = scmp.ne.s32.totalorder %s129, %s130
      %p144 = scmp.eq.s32.totalorder %s24, 1
      %p145 = por %p143, %p144
      %p147 = scmp.ne.s32.totalorder %s130, %s146
      %p148 = scmp.eq.s32.totalorder %s24, 0
      %p149 = por %p147, %p148
      %p150 = scmp.le.s32.totalorder 1, %s18
      %p151 = scmp.lt.s32.totalorder %s18, 3
      %p152 = pnand %p150, %p151
      %p153 = pneg %p152
      // Predicated region
      $region9: #{tpu_custom_call.1} parent=5 // pred_check
        _
      $region10: #{tpu_custom_call.1} parent=5 // pred_check_branch
        %155 = sbr.rel (%p152) target = $region12
      $region11: #{tpu_custom_call.1} parent=5 // pred_region
        %s156 = ssub.s32 %s18, 1
      $region12: #{tpu_custom_call.1} parent=5 // pred_fallthru
        _
      %p157 = scmp.lt.s32.totalorder %s18, 2
      // Predicated region
      $region13: #{tpu_custom_call.1} parent=5 // pred_check
        %p158 = pneg %p157
      $region14: #{tpu_custom_call.1} parent=5 // pred_check_branch
        %160 = sbr.rel (%p158) target = $region16
      $region15: #{tpu_custom_call.1} parent=5 // pred_region
        // Predicated region
        $region17: #{tpu_custom_call.1} parent=15 // pred_check
          %p161 = pneg %p54
        $region18: #{tpu_custom_call.1} parent=15 // pred_check_branch
          %163 = sbr.rel (%p161) target = $region20
        $region19: #{tpu_custom_call.1} parent=15 // pred_region
          %s164 = sand.u32 %s44, 1
          %s165 = scalar_lea.sflag [#allocation3], %s164
          %s166 = sand.u32 %s44, 1
          %s167 = smul.addr %s166, 432
          %s168 = scalar_lea.vmem [#allocation2], %s167
          %s169 = smul.u32 %s25, 2
          %s170 = sadd.s32 %s169, %s26
          %s171 = smul.u32 18, %s170
          %s172 = ssub.s32 19, %s171
          %p173 = scmp.lt.s32.totalorder %s172, 18
          %s174 = scalar_select %p173, %s172, 18
          %s175 = smul.u32 8, %s174
          %s176 = smul.u32 %s175, 3
          %s177 = ssub.s32 432, %s176
          %s178 = sshll.u32 %s177, 4
          %179 = vsyncadd %s165, %s178
          %p180 = scmp.ne.s32.totalorder 0, %s176
          %s181 = smul.addr %s171, 3
          %s182 = smul.addr %s181, 8
          %s183 = scalar_lea.hbm %s0, %s182
          %s184 = smul.u32 24, %s174
          %s185 = sshll.u32 %s183, 4
          %s186 = int_to_ptr.hbm [resolvable:$true] %s185
          %s187 = sshll.u32 %s168, 4
          %s188 = int_to_ptr.vmem [resolvable:$true] %s187
          %s189 = sshll.u32 %s184, 4
          %193 = dma.hbm_to_vmem [thread:$0]  (%p180), %s186, %s189, %s188, %s165, 384, 384, 24
        $region20: #{tpu_custom_call.1} parent=15 // pred_fallthru
          _
        // Predicated region
        $region21: #{tpu_custom_call.1} parent=15 // pred_check
          %p194 = pneg %p84
        $region22: #{tpu_custom_call.1} parent=15 // pred_check_branch
          %196 = sbr.rel (%p194) target = $region24
        $region23: #{tpu_custom_call.1} parent=15 // pred_region
          %s197 = sand.u32 %s74, 1
          %s198 = scalar_lea.sflag [#allocation6], %s197
          %s199 = sand.u32 %s74, 1
          %s200 = smul.addr %s199, 432
          %s201 = scalar_lea.vmem [#allocation5], %s200
          %s202 = smul.u32 %s25, 2
          %s203 = sadd.s32 %s202, %s26
          %s204 = smul.u32 18, %s203
          %s205 = ssub.s32 19, %s204
          %p206 = scmp.lt.s32.totalorder %s205, 18
          %s207 = scalar_select %p206, %s205, 18
          %s208 = smul.u32 8, %s207
          %s209 = smul.u32 %s208, 3
          %s210 = ssub.s32 432, %s209
          %s211 = sshll.u32 %s210, 4
          %212 = vsyncadd %s198, %s211
          %p213 = scmp.ne.s32.totalorder 0, %s209
          %s214 = smul.addr %s204, 3
          %s215 = smul.addr %s214, 8
          %s216 = scalar_lea.hbm %s1, %s215
          %s217 = smul.u32 24, %s207
          %s218 = sshll.u32 %s216, 4
          %s219 = int_to_ptr.hbm [resolvable:$true] %s218
          %s220 = sshll.u32 %s201, 4
          %s221 = int_to_ptr.vmem [resolvable:$true] %s220
          %s222 = sshll.u32 %s217, 4
          %226 = dma.hbm_to_vmem [thread:$0]  (%p213), %s219, %s222, %s221, %s198, 384, 384, 24
        $region24: #{tpu_custom_call.1} parent=15 // pred_fallthru
          _
      $region16: #{tpu_custom_call.1} parent=5 // pred_fallthru
        _
      %p227 = scmp.le.s32.totalorder 1, %s18
      %p228 = scmp.lt.s32.totalorder %s18, 3
      %p229 = pnand %p227, %p228
      %p230 = pneg %p229
      // Predicated region
      $region25: #{tpu_custom_call.1} parent=5 // pred_check
        _
      $region26: #{tpu_custom_call.1} parent=5 // pred_check_branch
        %232 = sbr.rel (%p229) target = $region28
      $region27: #{tpu_custom_call.1} parent=5 // pred_region
        %s233 = ssub.s32 %s18, 1
        %s234 = sand.u32 %s47, 1
        %s235 = scalar_lea.sflag [#allocation3], %s234
        %s236 = sand.u32 %s47, 1
        %s237 = smul.addr %s236, 432
        %s238 = scalar_lea.vmem [#allocation2], %s237
        // Predicated region
        $region29: #{tpu_custom_call.1} parent=27 // pred_check
          %p239 = pneg %p60
        $region30: #{tpu_custom_call.1} parent=27 // pred_check_branch
          %241 = sbr.rel (%p239) target = $region32
        $region31: #{tpu_custom_call.1} parent=27 // pred_region
          %243 = dma.done %s235, 6912
        $region32: #{tpu_custom_call.1} parent=27 // pred_fallthru
          _
        %s244 = sand.u32 %s77, 1
        %s245 = scalar_lea.sflag [#allocation6], %s244
        %s246 = sand.u32 %s77, 1
        %s247 = smul.addr %s246, 432
        %s248 = scalar_lea.vmem [#allocation5], %s247
        // Predicated region
        $region33: #{tpu_custom_call.1} parent=27 // pred_check
          %p249 = pneg %p90
        $region34: #{tpu_custom_call.1} parent=27 // pred_check_branch
          %251 = sbr.rel (%p249) target = $region36
        $region35: #{tpu_custom_call.1} parent=27 // pred_region
          %253 = dma.done %s245, 6912
        $region36: #{tpu_custom_call.1} parent=27 // pred_fallthru
          _
        %s254 = sand.u32 %s47, 1
        %s255 = scalar_lea.sflag [#allocation3], %s254
        %s256 = sand.u32 %s47, 1
        %s257 = smul.addr %s256, 432
        %s258 = scalar_lea.vmem [#allocation2], %s257
        %p259 = pneg %p60
        %p260 = pneg %p57
        %s261 = sand.u32 %s77, 1
        %s262 = scalar_lea.sflag [#allocation6], %s261
        %s263 = sand.u32 %s77, 1
        %s264 = smul.addr %s263, 432
        %s265 = scalar_lea.vmem [#allocation5], %s264
        %p266 = pneg %p90
        %p267 = pneg %p87
        %p268 = pneg %p116
        %p269 = pneg %p113
        %p270 = pneg %p142
        %p271 = pneg %p139
        %s272 = smul.u32 %s27, 2
        %s273 = sadd.s32 %s272, %s28
        %s274 = smul.u32 18, %s273
        %s275 = ssub.s32 19, %s274
        %p276 = scmp.lt.s32.totalorder %s275, 18
        %s277 = scalar_select %p276, %s275, 18
        %s278 = smul.u32 8, %s277
        %s279 = smul.u32 %s278, 3
        %s280 = smul.u32 %s27, 2
        %s281 = sadd.s32 %s280, %s28
        %s282 = smul.u32 18, %s281
        %s283 = ssub.s32 19, %s282
        %p284 = scmp.lt.s32.totalorder %s283, 18
        %s285 = scalar_select %p284, %s283, 18
        %s286 = smul.u32 8, %s285
        %s287 = smul.u32 %s286, 3
        %p288 = scmp.eq.s32.totalorder %s28, 0
        // Predicated region
        $region37: #{tpu_custom_call.1} parent=27 // pred_check
          %p289 = pneg %p288
        $region38: #{tpu_custom_call.1} parent=27 // pred_check_branch
          %291 = sbr.rel (%p289) target = $region40
        $region39: #{tpu_custom_call.1} parent=27 // pred_region
          %v292 = vlaneseq
          %vm293 = vcmp.ge.s32.totalorder %v292, 0
          %vm294 = vcmp.lt.s32.totalorder %v292, 384
          %vm295 = vmand %vm293, %vm294
          %296 = vst.msk [vmem:[#allocation7] sm:$0x7] %vm295, 0.0
          %297 = vst.msk [vmem:[#allocation8] sm:$0x7] %vm295, 0.0
        $region40: #{tpu_custom_call.1} parent=27 // pred_fallthru
          _
        %v298 = vld [vmem:[%s238] sm:$0xff]
        %v299 = vld [vmem:[%s238 + $0x8] sm:$0xff]
        %v300 = vld [vmem:[%s238 + $0x10] sm:$0xff]
        %v301 = vld [vmem:[%s238 + $0x18] sm:$0xff]
        %v302 = vld [vmem:[%s238 + $0x20] sm:$0xff]
        %v303 = vld [vmem:[%s238 + $0x28] sm:$0xff]
        %v304 = vld [vmem:[%s238 + $0x30] sm:$0xff]
        %v305 = vld [vmem:[%s238 + $0x38] sm:$0xff]
        %v306 = vld [vmem:[%s238 + $0x40] sm:$0xff]
        %v307 = vld [vmem:[%s238 + $0x48] sm:$0xff]
        %v308 = vld [vmem:[%s238 + $0x50] sm:$0xff]
        %v309 = vld [vmem:[%s238 + $0x58] sm:$0xff]
        %v310 = vld [vmem:[%s238 + $0x60] sm:$0xff]
        %v311 = vld [vmem:[%s238 + $0x68] sm:$0xff]
        %v312 = vld [vmem:[%s238 + $0x70] sm:$0xff]
        %v313 = vld [vmem:[%s238 + $0x78] sm:$0xff]
        %v314 = vld [vmem:[%s238 + $0x80] sm:$0xff]
        %v315 = vld [vmem:[%s238 + $0x88] sm:$0xff]
        %v316 = vld [vmem:[%s238 + $0x90] sm:$0xff]
        %v317 = vld [vmem:[%s238 + $0x98] sm:$0xff]
        %v318 = vld [vmem:[%s238 + $0xa0] sm:$0xff]
        %v319 = vld [vmem:[%s238 + $0xa8] sm:$0xff]
        %v320 = vld [vmem:[%s238 + $0xb0] sm:$0xff]
        %v321 = vld [vmem:[%s238 + $0xb8] sm:$0xff]
        %v322 = vld [vmem:[%s238 + $0xc0] sm:$0xff]
        %v323 = vld [vmem:[%s238 + $0xc8] sm:$0xff]
        %v324 = vld [vmem:[%s238 + $0xd0] sm:$0xff]
        %v325 = vld [vmem:[%s238 + $0xd8] sm:$0xff]
        %v326 = vld [vmem:[%s238 + $0xe0] sm:$0xff]
        %v327 = vld [vmem:[%s238 + $0xe8] sm:$0xff]
        %v328 = vld [vmem:[%s238 + $0xf0] sm:$0xff]
        %v329 = vld [vmem:[%s238 + $0xf8] sm:$0xff]
        %v330 = vld [vmem:[%s238 + $0x100] sm:$0xff]
        %v331 = vld [vmem:[%s238 + $0x108] sm:$0xff]
        %v332 = vld [vmem:[%s238 + $0x110] sm:$0xff]
        %v333 = vld [vmem:[%s238 + $0x118] sm:$0xff]
        %v334 = vld [vmem:[%s238 + $0x120] sm:$0xff]
        %v335 = vld [vmem:[%s238 + $0x128] sm:$0xff]
        %v336 = vld [vmem:[%s238 + $0x130] sm:$0xff]
        %v337 = vld [vmem:[%s238 + $0x138] sm:$0xff]
        %v338 = vld [vmem:[%s238 + $0x140] sm:$0xff]
        %v339 = vld [vmem:[%s238 + $0x148] sm:$0xff]
        %v340 = vld [vmem:[%s238 + $0x150] sm:$0xff]
        %v341 = vld [vmem:[%s238 + $0x158] sm:$0xff]
        %v342 = vld [vmem:[%s238 + $0x160] sm:$0xff]
        %v343 = vld [vmem:[%s238 + $0x168] sm:$0xff]
        %v344 = vld [vmem:[%s238 + $0x170] sm:$0xff]
        %v345 = vld [vmem:[%s238 + $0x178] sm:$0xff]
        %v346 = vld [vmem:[%s238 + $0x180] sm:$0xff]
        %v347 = vld [vmem:[%s238 + $0x188] sm:$0xff]
        %v348 = vld [vmem:[%s238 + $0x190] sm:$0xff]
        %v349 = vld [vmem:[%s238 + $0x198] sm:$0xff]
        %v350 = vld [vmem:[%s238 + $0x1a0] sm:$0xff]
        %v351 = vld [vmem:[%s238 + $0x1a8] sm:$0xff]
        %v352 = vld [vmem:[%s248] sm:$0xff]
        %v353 = vld [vmem:[%s248 + $0x8] sm:$0xff]
        %v354 = vld [vmem:[%s248 + $0x10] sm:$0xff]
        %v355 = vld [vmem:[%s248 + $0x18] sm:$0xff]
        %v356 = vld [vmem:[%s248 + $0x20] sm:$0xff]
        %v357 = vld [vmem:[%s248 + $0x28] sm:$0xff]
        %v358 = vld [vmem:[%s248 + $0x30] sm:$0xff]
        %v359 = vld [vmem:[%s248 + $0x38] sm:$0xff]
        %v360 = vld [vmem:[%s248 + $0x40] sm:$0xff]
        %v361 = vld [vmem:[%s248 + $0x48] sm:$0xff]
        %v362 = vld [vmem:[%s248 + $0x50] sm:$0xff]
        %v363 = vld [vmem:[%s248 + $0x58] sm:$0xff]
        %v364 = vld [vmem:[%s248 + $0x60] sm:$0xff]
        %v365 = vld [vmem:[%s248 + $0x68] sm:$0xff]
        %v366 = vld [vmem:[%s248 + $0x70] sm:$0xff]
        %v367 = vld [vmem:[%s248 + $0x78] sm:$0xff]
        %v368 = vld [vmem:[%s248 + $0x80] sm:$0xff]
        %v369 = vld [vmem:[%s248 + $0x88] sm:$0xff]
        %v370 = vld [vmem:[%s248 + $0x90] sm:$0xff]
        %v371 = vld [vmem:[%s248 + $0x98] sm:$0xff]
        %v372 = vld [vmem:[%s248 + $0xa0] sm:$0xff]
        %v373 = vld [vmem:[%s248 + $0xa8] sm:$0xff]
        %v374 = vld [vmem:[%s248 + $0xb0] sm:$0xff]
        %v375 = vld [vmem:[%s248 + $0xb8] sm:$0xff]
        %v376 = vld [vmem:[%s248 + $0xc0] sm:$0xff]
        %v377 = vld [vmem:[%s248 + $0xc8] sm:$0xff]
        %v378 = vld [vmem:[%s248 + $0xd0] sm:$0xff]
        %v379 = vld [vmem:[%s248 + $0xd8] sm:$0xff]
        %v380 = vld [vmem:[%s248 + $0xe0] sm:$0xff]
        %v381 = vld [vmem:[%s248 + $0xe8] sm:$0xff]
        %v382 = vld [vmem:[%s248 + $0xf0] sm:$0xff]
        %v383 = vld [vmem:[%s248 + $0xf8] sm:$0xff]
        %v384 = vld [vmem:[%s248 + $0x100] sm:$0xff]
        %v385 = vld [vmem:[%s248 + $0x108] sm:$0xff]
        %v386 = vld [vmem:[%s248 + $0x110] sm:$0xff]
        %v387 = vld [vmem:[%s248 + $0x118] sm:$0xff]
        %v388 = vld [vmem:[%s248 + $0x120] sm:$0xff]
        %v389 = vld [vmem:[%s248 + $0x128] sm:$0xff]
        %v390 = vld [vmem:[%s248 + $0x130] sm:$0xff]
        %v391 = vld [vmem:[%s248 + $0x138] sm:$0xff]
        %v392 = vld [vmem:[%s248 + $0x140] sm:$0xff]
        %v393 = vld [vmem:[%s248 + $0x148] sm:$0xff]
        %v394 = vld [vmem:[%s248 + $0x150] sm:$0xff]
        %v395 = vld [vmem:[%s248 + $0x158] sm:$0xff]
        %v396 = vld [vmem:[%s248 + $0x160] sm:$0xff]
        %v397 = vld [vmem:[%s248 + $0x168] sm:$0xff]
        %v398 = vld [vmem:[%s248 + $0x170] sm:$0xff]
        %v399 = vld [vmem:[%s248 + $0x178] sm:$0xff]
        %v400 = vld [vmem:[%s248 + $0x180] sm:$0xff]
        %v401 = vld [vmem:[%s248 + $0x188] sm:$0xff]
        %v402 = vld [vmem:[%s248 + $0x190] sm:$0xff]
        %v403 = vld [vmem:[%s248 + $0x198] sm:$0xff]
        %v404 = vld [vmem:[%s248 + $0x1a0] sm:$0xff]
        %v405 = vld [vmem:[%s248 + $0x1a8] sm:$0xff]
        %s406 = smul.u32 %s27, 2
        %s407 = sadd.s32 %s406, %s28
        %s408 = smul.u32 %s407, 144
        %s409 = ssub.s32 150, %s408
        %p410 = scmp.ge.s32.totalorder %s409, 144
        // Predicated region
        $region41: #{tpu_custom_call.1} parent=27 // pred_check
          %p411 = pneg %p410
        $region42: #{tpu_custom_call.1} parent=27 // pred_check_branch
          %413 = sbr.rel (%p411) target = $region44
        $region43: #{tpu_custom_call.1} parent=27 // pred_region
          %vm414 = vcmp.eq.f32.partialorder %v352, %v352
          %vm415 = vcmp.eq.f32.partialorder %v353, %v353
          %vm416 = vcmp.eq.f32.partialorder %v354, %v354
          %vm417 = vcmp.eq.f32.partialorder %v355, %v355
          %vm418 = vcmp.eq.f32.partialorder %v356, %v356
          %vm419 = vcmp.eq.f32.partialorder %v357, %v357
          %vm420 = vcmp.eq.f32.partialorder %v358, %v358
          %vm421 = vcmp.eq.f32.partialorder %v359, %v359
          %vm422 = vcmp.eq.f32.partialorder %v360, %v360
          %vm423 = vcmp.eq.f32.partialorder %v361, %v361
          %vm424 = vcmp.eq.f32.partialorder %v362, %v362
          %vm425 = vcmp.eq.f32.partialorder %v363, %v363
          %vm426 = vcmp.eq.f32.partialorder %v364, %v364
          %vm427 = vcmp.eq.f32.partialorder %v365, %v365
          %vm428 = vcmp.eq.f32.partialorder %v366, %v366
          %vm429 = vcmp.eq.f32.partialorder %v367, %v367
          %vm430 = vcmp.eq.f32.partialorder %v368, %v368
          %vm431 = vcmp.eq.f32.partialorder %v369, %v369
          %vm432 = vcmp.eq.f32.partialorder %v370, %v370
          %vm433 = vcmp.eq.f32.partialorder %v371, %v371
          %vm434 = vcmp.eq.f32.partialorder %v372, %v372
          %vm435 = vcmp.eq.f32.partialorder %v373, %v373
          %vm436 = vcmp.eq.f32.partialorder %v374, %v374
          %vm437 = vcmp.eq.f32.partialorder %v375, %v375
          %vm438 = vcmp.eq.f32.partialorder %v376, %v376
          %vm439 = vcmp.eq.f32.partialorder %v377, %v377
          %vm440 = vcmp.eq.f32.partialorder %v378, %v378
          %vm441 = vcmp.eq.f32.partialorder %v379, %v379
          %vm442 = vcmp.eq.f32.partialorder %v380, %v380
          %vm443 = vcmp.eq.f32.partialorder %v381, %v381
          %vm444 = vcmp.eq.f32.partialorder %v382, %v382
          %vm445 = vcmp.eq.f32.partialorder %v383, %v383
          %vm446 = vcmp.eq.f32.partialorder %v384, %v384
          %vm447 = vcmp.eq.f32.partialorder %v385, %v385
          %vm448 = vcmp.eq.f32.partialorder %v386, %v386
          %vm449 = vcmp.eq.f32.partialorder %v387, %v387
          %vm450 = vcmp.eq.f32.partialorder %v388, %v388
          %vm451 = vcmp.eq.f32.partialorder %v389, %v389
          %vm452 = vcmp.eq.f32.partialorder %v390, %v390
          %vm453 = vcmp.eq.f32.partialorder %v391, %v391
          %vm454 = vcmp.eq.f32.partialorder %v392, %v392
          %vm455 = vcmp.eq.f32.partialorder %v393, %v393
          %vm456 = vcmp.eq.f32.partialorder %v394, %v394
          %vm457 = vcmp.eq.f32.partialorder %v395, %v395
          %vm458 = vcmp.eq.f32.partialorder %v396, %v396
          %vm459 = vcmp.eq.f32.partialorder %v397, %v397
          %vm460 = vcmp.eq.f32.partialorder %v398, %v398
          %vm461 = vcmp.eq.f32.partialorder %v399, %v399
          %vm462 = vcmp.eq.f32.partialorder %v400, %v400
          %vm463 = vcmp.eq.f32.partialorder %v401, %v401
          %vm464 = vcmp.eq.f32.partialorder %v402, %v402
          %vm465 = vcmp.eq.f32.partialorder %v403, %v403
          %vm466 = vcmp.eq.f32.partialorder %v404, %v404
          %vm467 = vcmp.eq.f32.partialorder %v405, %v405
          %v468 = vsub.f32 %v298, %v352
          %v469 = vsub.f32 %v299, %v353
          %v470 = vsub.f32 %v300, %v354
          %v471 = vsub.f32 %v301, %v355
          %v472 = vsub.f32 %v302, %v356
          %v473 = vsub.f32 %v303, %v357
          %v474 = vsub.f32 %v304, %v358
          %v475 = vsub.f32 %v305, %v359
          %v476 = vsub.f32 %v306, %v360
          %v477 = vsub.f32 %v307, %v361
          %v478 = vsub.f32 %v308, %v362
          %v479 = vsub.f32 %v309, %v363
          %v480 = vsub.f32 %v310, %v364
          %v481 = vsub.f32 %v311, %v365
          %v482 = vsub.f32 %v312, %v366
          %v483 = vsub.f32 %v313, %v367
          %v484 = vsub.f32 %v314, %v368
          %v485 = vsub.f32 %v315, %v369
          %v486 = vsub.f32 %v316, %v370
          %v487 = vsub.f32 %v317, %v371
          %v488 = vsub.f32 %v318, %v372
          %v489 = vsub.f32 %v319, %v373
          %v490 = vsub.f32 %v320, %v374
          %v491 = vsub.f32 %v321, %v375
          %v492 = vsub.f32 %v322, %v376
          %v493 = vsub.f32 %v323, %v377
          %v494 = vsub.f32 %v324, %v378
          %v495 = vsub.f32 %v325, %v379
          %v496 = vsub.f32 %v326, %v380
          %v497 = vsub.f32 %v327, %v381
          %v498 = vsub.f32 %v328, %v382
          %v499 = vsub.f32 %v329, %v383
          %v500 = vsub.f32 %v330, %v384
          %v501 = vsub.f32 %v331, %v385
          %v502 = vsub.f32 %v332, %v386
          %v503 = vsub.f32 %v333, %v387
          %v504 = vsub.f32 %v334, %v388
          %v505 = vsub.f32 %v335, %v389
          %v506 = vsub.f32 %v336, %v390
          %v507 = vsub.f32 %v337, %v391
          %v508 = vsub.f32 %v338, %v392
          %v509 = vsub.f32 %v339, %v393
          %v510 = vsub.f32 %v340, %v394
          %v511 = vsub.f32 %v341, %v395
          %v512 = vsub.f32 %v342, %v396
          %v513 = vsub.f32 %v343, %v397
          %v514 = vsub.f32 %v344, %v398
          %v515 = vsub.f32 %v345, %v399
          %v516 = vsub.f32 %v346, %v400
          %v517 = vsub.f32 %v347, %v401
          %v518 = vsub.f32 %v348, %v402
          %v519 = vsub.f32 %v349, %v403
          %v520 = vsub.f32 %v350, %v404
          %v521 = vsub.f32 %v351, %v405
          %v522 = vmul.f32 %v468, %v468
          %v523 = vmul.f32 %v469, %v469
          %v524 = vmul.f32 %v470, %v470
          %v525 = vmul.f32 %v471, %v471
          %v526 = vmul.f32 %v472, %v472
          %v527 = vmul.f32 %v473, %v473
          %v528 = vmul.f32 %v474, %v474
          %v529 = vmul.f32 %v475, %v475
          %v530 = vmul.f32 %v476, %v476
          %v531 = vmul.f32 %v477, %v477
          %v532 = vmul.f32 %v478, %v478
          %v533 = vmul.f32 %v479, %v479
          %v534 = vmul.f32 %v480, %v480
          %v535 = vmul.f32 %v481, %v481
          %v536 = vmul.f32 %v482, %v482
          %v537 = vmul.f32 %v483, %v483
          %v538 = vmul.f32 %v484, %v484
          %v539 = vmul.f32 %v485, %v485
          %v540 = vmul.f32 %v486, %v486
          %v541 = vmul.f32 %v487, %v487
          %v542 = vmul.f32 %v488, %v488
          %v543 = vmul.f32 %v489, %v489
          %v544 = vmul.f32 %v490, %v490
          %v545 = vmul.f32 %v491, %v491
          %v546 = vmul.f32 %v492, %v492
          %v547 = vmul.f32 %v493, %v493
          %v548 = vmul.f32 %v494, %v494
          %v549 = vmul.f32 %v495, %v495
          %v550 = vmul.f32 %v496, %v496
          %v551 = vmul.f32 %v497, %v497
          %v552 = vmul.f32 %v498, %v498
          %v553 = vmul.f32 %v499, %v499
          %v554 = vmul.f32 %v500, %v500
          %v555 = vmul.f32 %v501, %v501
          %v556 = vmul.f32 %v502, %v502
          %v557 = vmul.f32 %v503, %v503
          %v558 = vmul.f32 %v504, %v504
          %v559 = vmul.f32 %v505, %v505
          %v560 = vmul.f32 %v506, %v506
          %v561 = vmul.f32 %v507, %v507
          %v562 = vmul.f32 %v508, %v508
          %v563 = vmul.f32 %v509, %v509
          %v564 = vmul.f32 %v510, %v510
          %v565 = vmul.f32 %v511, %v511
          %v566 = vmul.f32 %v512, %v512
          %v567 = vmul.f32 %v513, %v513
          %v568 = vmul.f32 %v514, %v514
          %v569 = vmul.f32 %v515, %v515
          %v570 = vmul.f32 %v516, %v516
          %v571 = vmul.f32 %v517, %v517
          %v572 = vmul.f32 %v518, %v518
          %v573 = vmul.f32 %v519, %v519
          %v574 = vmul.f32 %v520, %v520
          %v575 = vmul.f32 %v521, %v521
          %v576 = vsel %vm414, %v522, 0.0
          %v577 = vsel %vm415, %v523, 0.0
          %v578 = vsel %vm416, %v524, 0.0
          %v579 = vsel %vm417, %v525, 0.0
          %v580 = vsel %vm418, %v526, 0.0
          %v581 = vsel %vm419, %v527, 0.0
          %v582 = vsel %vm420, %v528, 0.0
          %v583 = vsel %vm421, %v529, 0.0
          %v584 = vsel %vm422, %v530, 0.0
          %v585 = vsel %vm423, %v531, 0.0
          %v586 = vsel %vm424, %v532, 0.0
          %v587 = vsel %vm425, %v533, 0.0
          %v588 = vsel %vm426, %v534, 0.0
          %v589 = vsel %vm427, %v535, 0.0
          %v590 = vsel %vm428, %v536, 0.0
          %v591 = vsel %vm429, %v537, 0.0
          %v592 = vsel %vm430, %v538, 0.0
          %v593 = vsel %vm431, %v539, 0.0
          %v594 = vsel %vm432, %v540, 0.0
          %v595 = vsel %vm433, %v541, 0.0
          %v596 = vsel %vm434, %v542, 0.0
          %v597 = vsel %vm435, %v543, 0.0
          %v598 = vsel %vm436, %v544, 0.0
          %v599 = vsel %vm437, %v545, 0.0
          %v600 = vsel %vm438, %v546, 0.0
          %v601 = vsel %vm439, %v547, 0.0
          %v602 = vsel %vm440, %v548, 0.0
          %v603 = vsel %vm441, %v549, 0.0
          %v604 = vsel %vm442, %v550, 0.0
          %v605 = vsel %vm443, %v551, 0.0
          %v606 = vsel %vm444, %v552, 0.0
          %v607 = vsel %vm445, %v553, 0.0
          %v608 = vsel %vm446, %v554, 0.0
          %v609 = vsel %vm447, %v555, 0.0
          %v610 = vsel %vm448, %v556, 0.0
          %v611 = vsel %vm449, %v557, 0.0
          %v612 = vsel %vm450, %v558, 0.0
          %v613 = vsel %vm451, %v559, 0.0
          %v614 = vsel %vm452, %v560, 0.0
          %v615 = vsel %vm453, %v561, 0.0
          %v616 = vsel %vm454, %v562, 0.0
          %v617 = vsel %vm455, %v563, 0.0
          %v618 = vsel %vm456, %v564, 0.0
          %v619 = vsel %vm457, %v565, 0.0
          %v620 = vsel %vm458, %v566, 0.0
          %v621 = vsel %vm459, %v567, 0.0
          %v622 = vsel %vm460, %v568, 0.0
          %v623 = vsel %vm461, %v569, 0.0
          %v624 = vsel %vm462, %v570, 0.0
          %v625 = vsel %vm463, %v571, 0.0
          %v626 = vsel %vm464, %v572, 0.0
          %v627 = vsel %vm465, %v573, 0.0
          %v628 = vsel %vm466, %v574, 0.0
          %v629 = vsel %vm467, %v575, 0.0
          %v630 = vsel %vm414, 1, 0
          %v631 = vsel %vm415, 1, 0
          %v632 = vsel %vm416, 1, 0
          %v633 = vsel %vm417, 1, 0
          %v634 = vsel %vm418, 1, 0
          %v635 = vsel %vm419, 1, 0
          %v636 = vsel %vm420, 1, 0
          %v637 = vsel %vm421, 1, 0
          %v638 = vsel %vm422, 1, 0
          %v639 = vsel %vm423, 1, 0
          %v640 = vsel %vm424, 1, 0
          %v641 = vsel %vm425, 1, 0
          %v642 = vsel %vm426, 1, 0
          %v643 = vsel %vm427, 1, 0
          %v644 = vsel %vm428, 1, 0
          %v645 = vsel %vm429, 1, 0
          %v646 = vsel %vm430, 1, 0
          %v647 = vsel %vm431, 1, 0
          %v648 = vsel %vm432, 1, 0
          %v649 = vsel %vm433, 1, 0
          %v650 = vsel %vm434, 1, 0
          %v651 = vsel %vm435, 1, 0
          %v652 = vsel %vm436, 1, 0
          %v653 = vsel %vm437, 1, 0
          %v654 = vsel %vm438, 1, 0
          %v655 = vsel %vm439, 1, 0
          %v656 = vsel %vm440, 1, 0
          %v657 = vsel %vm441, 1, 0
          %v658 = vsel %vm442, 1, 0
          %v659 = vsel %vm443, 1, 0
          %v660 = vsel %vm444, 1, 0
          %v661 = vsel %vm445, 1, 0
          %v662 = vsel %vm446, 1, 0
          %v663 = vsel %vm447, 1, 0
          %v664 = vsel %vm448, 1, 0
          %v665 = vsel %vm449, 1, 0
          %v666 = vsel %vm450, 1, 0
          %v667 = vsel %vm451, 1, 0
          %v668 = vsel %vm452, 1, 0
          %v669 = vsel %vm453, 1, 0
          %v670 = vsel %vm454, 1, 0
          %v671 = vsel %vm455, 1, 0
          %v672 = vsel %vm456, 1, 0
          %v673 = vsel %vm457, 1, 0
          %v674 = vsel %vm458, 1, 0
          %v675 = vsel %vm459, 1, 0
          %v676 = vsel %vm460, 1, 0
          %v677 = vsel %vm461, 1, 0
          %v678 = vsel %vm462, 1, 0
          %v679 = vsel %vm463, 1, 0
          %v680 = vsel %vm464, 1, 0
          %v681 = vsel %vm465, 1, 0
          %v682 = vsel %vm466, 1, 0
          %v683 = vsel %vm467, 1, 0
          %v684 = vcvt.s32.f32 %v630
          %v685 = vcvt.s32.f32 %v631
          %v686 = vcvt.s32.f32 %v632
          %v687 = vcvt.s32.f32 %v633
          %v688 = vcvt.s32.f32 %v634
          %v689 = vcvt.s32.f32 %v635
          %v690 = vcvt.s32.f32 %v636
          %v691 = vcvt.s32.f32 %v637
          %v692 = vcvt.s32.f32 %v638
          %v693 = vcvt.s32.f32 %v639
          %v694 = vcvt.s32.f32 %v640
          %v695 = vcvt.s32.f32 %v641
          %v696 = vcvt.s32.f32 %v642
          %v697 = vcvt.s32.f32 %v643
          %v698 = vcvt.s32.f32 %v644
          %v699 = vcvt.s32.f32 %v645
          %v700 = vcvt.s32.f32 %v646
          %v701 = vcvt.s32.f32 %v647
          %v702 = vcvt.s32.f32 %v648
          %v703 = vcvt.s32.f32 %v649
          %v704 = vcvt.s32.f32 %v650
          %v705 = vcvt.s32.f32 %v651
          %v706 = vcvt.s32.f32 %v652
          %v707 = vcvt.s32.f32 %v653
          %v708 = vcvt.s32.f32 %v654
          %v709 = vcvt.s32.f32 %v655
          %v710 = vcvt.s32.f32 %v656
          %v711 = vcvt.s32.f32 %v657
          %v712 = vcvt.s32.f32 %v658
          %v713 = vcvt.s32.f32 %v659
          %v714 = vcvt.s32.f32 %v660
          %v715 = vcvt.s32.f32 %v661
          %v716 = vcvt.s32.f32 %v662
          %v717 = vcvt.s32.f32 %v663
          %v718 = vcvt.s32.f32 %v664
          %v719 = vcvt.s32.f32 %v665
          %v720 = vcvt.s32.f32 %v666
          %v721 = vcvt.s32.f32 %v667
          %v722 = vcvt.s32.f32 %v668
          %v723 = vcvt.s32.f32 %v669
          %v724 = vcvt.s32.f32 %v670
          %v725 = vcvt.s32.f32 %v671
          %v726 = vcvt.s32.f32 %v672
          %v727 = vcvt.s32.f32 %v673
          %v728 = vcvt.s32.f32 %v674
          %v729 = vcvt.s32.f32 %v675
          %v730 = vcvt.s32.f32 %v676
          %v731 = vcvt.s32.f32 %v677
          %v732 = vcvt.s32.f32 %v678
          %v733 = vcvt.s32.f32 %v679
          %v734 = vcvt.s32.f32 %v680
          %v735 = vcvt.s32.f32 %v681
          %v736 = vcvt.s32.f32 %v682
          %v737 = vcvt.s32.f32 %v683
          %v738 = vld [vmem:[#allocation7] sm:$0x7]
          %v739 = vadd.f32 %v576, %v579
          %v740 = vadd.f32 %v739, %v582
          %v741 = vadd.f32 %v740, %v585
          %v742 = vadd.f32 %v741, %v588
          %v743 = vadd.f32 %v742, %v591
          %v744 = vadd.f32 %v743, %v594
          %v745 = vadd.f32 %v744, %v597
          %v746 = vadd.f32 %v745, %v600
          %v747 = vadd.f32 %v746, %v603
          %v748 = vadd.f32 %v747, %v606
          %v749 = vadd.f32 %v748, %v609
          %v750 = vadd.f32 %v749, %v612
          %v751 = vadd.f32 %v750, %v615
          %v752 = vadd.f32 %v751, %v618
          %v753 = vadd.f32 %v752, %v621
          %v754 = vadd.f32 %v753, %v624
          %v755 = vadd.f32 %v754, %v627
          %v756 = vrot.slane %v755, 4
          %v757 = vadd.f32 %v755, %v756
          %v758 = vrot.slane %v757, 2
          %v759 = vadd.f32 %v757, %v758
          %v760 = vrot.slane %v759, 1
          %v761 = vadd.f32 %v759, %v760
          %v762 = vadd.f32 %v577, %v580
          %v763 = vadd.f32 %v762, %v583
          %v764 = vadd.f32 %v763, %v586
          %v765 = vadd.f32 %v764, %v589
          %v766 = vadd.f32 %v765, %v592
          %v767 = vadd.f32 %v766, %v595
          %v768 = vadd.f32 %v767, %v598
          %v769 = vadd.f32 %v768, %v601
          %v770 = vadd.f32 %v769, %v604
          %v771 = vadd.f32 %v770, %v607
          %v772 = vadd.f32 %v771, %v610
          %v773 = vadd.f32 %v772, %v613
          %v774 = vadd.f32 %v773, %v616
          %v775 = vadd.f32 %v774, %v619
          %v776 = vadd.f32 %v775, %v622
          %v777 = vadd.f32 %v776, %v625
          %v778 = vadd.f32 %v777, %v628
          %v779 = vrot.slane %v778, 4
          %v780 = vadd.f32 %v778, %v779
          %v781 = vrot.slane %v780, 2
          %v782 = vadd.f32 %v780, %v781
          %v783 = vrot.slane %v782, 1
          %v784 = vadd.f32 %v782, %v783
          %v785 = vadd.f32 %v578, %v581
          %v786 = vadd.f32 %v785, %v584
          %v787 = vadd.f32 %v786, %v587
          %v788 = vadd.f32 %v787, %v590
          %v789 = vadd.f32 %v788, %v593
          %v790 = vadd.f32 %v789, %v596
          %v791 = vadd.f32 %v790, %v599
          %v792 = vadd.f32 %v791, %v602
          %v793 = vadd.f32 %v792, %v605
          %v794 = vadd.f32 %v793, %v608
          %v795 = vadd.f32 %v794, %v611
          %v796 = vadd.f32 %v795, %v614
          %v797 = vadd.f32 %v796, %v617
          %v798 = vadd.f32 %v797, %v620
          %v799 = vadd.f32 %v798, %v623
          %v800 = vadd.f32 %v799, %v626
          %v801 = vadd.f32 %v800, %v629
          %v802 = vrot.slane %v801, 4
          %v803 = vadd.f32 %v801, %v802
          %v804 = vrot.slane %v803, 2
          %v805 = vadd.f32 %v803, %v804
          %v806 = vrot.slane %v805, 1
          %v807 = vadd.f32 %v805, %v806
          %v811 = vrot.slane %v784, 7
          %v812 = vrot.slane %v807, 6
          %vm813 = vcmask 1040384
          %v814 = vsel %vm813, %v761, %v811
          %vm815 = vcmask 1041408
          %v816 = vsel %vm815, %v814, %v812
          %v818 = vadd.f32 %v738, %v816
          %v819 = vlaneseq
          %vm820 = vcmp.ge.s32.totalorder %v819, 0
          %vm821 = vcmp.lt.s32.totalorder %v819, 384
          %vm822 = vmand %vm820, %vm821
          %823 = vst.msk [vmem:[#allocation7] sm:$0x7] %vm822, %v818
          %v824 = vld [vmem:[#allocation8] sm:$0x7]
          %v825 = vadd.f32 %v684, %v687
          %v826 = vadd.f32 %v825, %v690
          %v827 = vadd.f32 %v826, %v693
          %v828 = vadd.f32 %v827, %v696
          %v829 = vadd.f32 %v828, %v699
          %v830 = vadd.f32 %v829, %v702
          %v831 = vadd.f32 %v830, %v705
          %v832 = vadd.f32 %v831, %v708
          %v833 = vadd.f32 %v832, %v711
          %v834 = vadd.f32 %v833, %v714
          %v835 = vadd.f32 %v834, %v717
          %v836 = vadd.f32 %v835, %v720
          %v837 = vadd.f32 %v836, %v723
          %v838 = vadd.f32 %v837, %v726
          %v839 = vadd.f32 %v838, %v729
          %v840 = vadd.f32 %v839, %v732
          %v841 = vadd.f32 %v840, %v735
          %v842 = vrot.slane %v841, 4
          %v843 = vadd.f32 %v841, %v842
          %v844 = vrot.slane %v843, 2
          %v845 = vadd.f32 %v843, %v844
          %v846 = vrot.slane %v845, 1
          %v847 = vadd.f32 %v845, %v846
          %v848 = vadd.f32 %v685, %v688
          %v849 = vadd.f32 %v848, %v691
          %v850 = vadd.f32 %v849, %v694
          %v851 = vadd.f32 %v850, %v697
          %v852 = vadd.f32 %v851, %v700
          %v853 = vadd.f32 %v852, %v703
          %v854 = vadd.f32 %v853, %v706
          %v855 = vadd.f32 %v854, %v709
          %v856 = vadd.f32 %v855, %v712
          %v857 = vadd.f32 %v856, %v715
          %v858 = vadd.f32 %v857, %v718
          %v859 = vadd.f32 %v858, %v721
          %v860 = vadd.f32 %v859, %v724
          %v861 = vadd.f32 %v860, %v727
          %v862 = vadd.f32 %v861, %v730
          %v863 = vadd.f32 %v862, %v733
          %v864 = vadd.f32 %v863, %v736
          %v865 = vrot.slane %v864, 4
          %v866 = vadd.f32 %v864, %v865
          %v867 = vrot.slane %v866, 2
          %v868 = vadd.f32 %v866, %v867
          %v869 = vrot.slane %v868, 1
          %v870 = vadd.f32 %v868, %v869
          %v871 = vadd.f32 %v686, %v689
          %v872 = vadd.f32 %v871, %v692
          %v873 = vadd.f32 %v872, %v695
          %v874 = vadd.f32 %v873, %v698
          %v875 = vadd.f32 %v874, %v701
          %v876 = vadd.f32 %v875, %v704
          %v877 = vadd.f32 %v876, %v707
          %v878 = vadd.f32 %v877, %v710
          %v879 = vadd.f32 %v878, %v713
          %v880 = vadd.f32 %v879, %v716
          %v881 = vadd.f32 %v880, %v719
          %v882 = vadd.f32 %v881, %v722
          %v883 = vadd.f32 %v882, %v725
          %v884 = vadd.f32 %v883, %v728
          %v885 = vadd.f32 %v884, %v731
          %v886 = vadd.f32 %v885, %v734
          %v887 = vadd.f32 %v886, %v737
          %v888 = vrot.slane %v887, 4
          %v889 = vadd.f32 %v887, %v888
          %v890 = vrot.slane %v889, 2
          %v891 = vadd.f32 %v889, %v890
          %v892 = vrot.slane %v891, 1
          %v893 = vadd.f32 %v891, %v892
          %v897 = vrot.slane %v870, 7
          %v898 = vrot.slane %v893, 6
          %v899 = vsel %vm813, %v847, %v897
          %v900 = vsel %vm815, %v899, %v898
          %v902 = vadd.f32 %v824, %v900
          %903 = vst.msk [vmem:[#allocation8] sm:$0x7] %vm822, %v902
        $region44: #{tpu_custom_call.1} parent=27 // pred_fallthru
          _
        %p904 = scmp.lt.s32.totalorder %s409, 144
        // Predicated region
        $region45: #{tpu_custom_call.1} parent=27 // pred_check
          %p905 = pneg %p904
        $region46: #{tpu_custom_call.1} parent=27 // pred_check_branch
          %907 = sbr.rel (%p905) target = $region48
        $region47: #{tpu_custom_call.1} parent=27 // pred_region
          %v908 = vlaneseq
          %v909 = vshrl.u32 %v908, 7
          %v910 = vadd.s32 %v909, 8
          %v911 = vadd.s32 %v909, 16
          %v912 = vadd.s32 %v909, 24
          %v913 = vadd.s32 %v909, 32
          %v914 = vadd.s32 %v909, 40
          %v915 = vadd.s32 %v909, 48
          %v916 = vadd.s32 %v909, 56
          %v917 = vadd.s32 %v909, 64
          %v918 = vadd.s32 %v909, 72
          %v919 = vadd.s32 %v909, 80
          %v920 = vadd.s32 %v909, 88
          %v921 = vadd.s32 %v909, 96
          %v922 = vadd.s32 %v909, 104
          %v923 = vadd.s32 %v909, 112
          %v924 = vadd.s32 %v909, 120
          %v925 = vadd.s32 %v909, 128
          %v926 = vadd.s32 %v909, 136
          %vm927 = vcmp.eq.f32.partialorder %v352, %v352
          %vm928 = vcmp.eq.f32.partialorder %v353, %v353
          %vm929 = vcmp.eq.f32.partialorder %v354, %v354
          %vm930 = vcmp.eq.f32.partialorder %v355, %v355
          %vm931 = vcmp.eq.f32.partialorder %v356, %v356
          %vm932 = vcmp.eq.f32.partialorder %v357, %v357
          %vm933 = vcmp.eq.f32.partialorder %v358, %v358
          %vm934 = vcmp.eq.f32.partialorder %v359, %v359
          %vm935 = vcmp.eq.f32.partialorder %v360, %v360
          %vm936 = vcmp.eq.f32.partialorder %v361, %v361
          %vm937 = vcmp.eq.f32.partialorder %v362, %v362
          %vm938 = vcmp.eq.f32.partialorder %v363, %v363
          %vm939 = vcmp.eq.f32.partialorder %v364, %v364
          %vm940 = vcmp.eq.f32.partialorder %v365, %v365
          %vm941 = vcmp.eq.f32.partialorder %v366, %v366
          %vm942 = vcmp.eq.f32.partialorder %v367, %v367
          %vm943 = vcmp.eq.f32.partialorder %v368, %v368
          %vm944 = vcmp.eq.f32.partialorder %v369, %v369
          %vm945 = vcmp.eq.f32.partialorder %v370, %v370
          %vm946 = vcmp.eq.f32.partialorder %v371, %v371
          %vm947 = vcmp.eq.f32.partialorder %v372, %v372
          %vm948 = vcmp.eq.f32.partialorder %v373, %v373
          %vm949 = vcmp.eq.f32.partialorder %v374, %v374
          %vm950 = vcmp.eq.f32.partialorder %v375, %v375
          %vm951 = vcmp.eq.f32.partialorder %v376, %v376
          %vm952 = vcmp.eq.f32.partialorder %v377, %v377
          %vm953 = vcmp.eq.f32.partialorder %v378, %v378
          %vm954 = vcmp.eq.f32.partialorder %v379, %v379
          %vm955 = vcmp.eq.f32.partialorder %v380, %v380
          %vm956 = vcmp.eq.f32.partialorder %v381, %v381
          %vm957 = vcmp.eq.f32.partialorder %v382, %v382
          %vm958 = vcmp.eq.f32.partialorder %v383, %v383
          %vm959 = vcmp.eq.f32.partialorder %v384, %v384
          %vm960 = vcmp.eq.f32.partialorder %v385, %v385
          %vm961 = vcmp.eq.f32.partialorder %v386, %v386
          %vm962 = vcmp.eq.f32.partialorder %v387, %v387
          %vm963 = vcmp.eq.f32.partialorder %v388, %v388
          %vm964 = vcmp.eq.f32.partialorder %v389, %v389
          %vm965 = vcmp.eq.f32.partialorder %v390, %v390
          %vm966 = vcmp.eq.f32.partialorder %v391, %v391
          %vm967 = vcmp.eq.f32.partialorder %v392, %v392
          %vm968 = vcmp.eq.f32.partialorder %v393, %v393
          %vm969 = vcmp.eq.f32.partialorder %v394, %v394
          %vm970 = vcmp.eq.f32.partialorder %v395, %v395
          %vm971 = vcmp.eq.f32.partialorder %v396, %v396
          %vm972 = vcmp.eq.f32.partialorder %v397, %v397
          %vm973 = vcmp.eq.f32.partialorder %v398, %v398
          %vm974 = vcmp.eq.f32.partialorder %v399, %v399
          %vm975 = vcmp.eq.f32.partialorder %v400, %v400
          %vm976 = vcmp.eq.f32.partialorder %v401, %v401
          %vm977 = vcmp.eq.f32.partialorder %v402, %v402
          %vm978 = vcmp.eq.f32.partialorder %v403, %v403
          %vm979 = vcmp.eq.f32.partialorder %v404, %v404
          %vm980 = vcmp.eq.f32.partialorder %v405, %v405
          %v981 = vstv %s409
          %vm982 = vcmp.lt.s32.totalorder %v909, %v981
          %vm983 = vcmp.lt.s32.totalorder %v910, %v981
          %vm984 = vcmp.lt.s32.totalorder %v911, %v981
          %vm985 = vcmp.lt.s32.totalorder %v912, %v981
          %vm986 = vcmp.lt.s32.totalorder %v913, %v981
          %vm987 = vcmp.lt.s32.totalorder %v914, %v981
          %vm988 = vcmp.lt.s32.totalorder %v915, %v981
          %vm989 = vcmp.lt.s32.totalorder %v916, %v981
          %vm990 = vcmp.lt.s32.totalorder %v917, %v981
          %vm991 = vcmp.lt.s32.totalorder %v918, %v981
          %vm992 = vcmp.lt.s32.totalorder %v919, %v981
          %vm993 = vcmp.lt.s32.totalorder %v920, %v981
          %vm994 = vcmp.lt.s32.totalorder %v921, %v981
          %vm995 = vcmp.lt.s32.totalorder %v922, %v981
          %vm996 = vcmp.lt.s32.totalorder %v923, %v981
          %vm997 = vcmp.lt.s32.totalorder %v924, %v981
          %vm998 = vcmp.lt.s32.totalorder %v925, %v981
          %vm999 = vcmp.lt.s32.totalorder %v926, %v981
          %vm1000 = vmand %vm927, %vm982
          %vm1001 = vmand %vm928, %vm982
          %vm1002 = vmand %vm929, %vm982
          %vm1003 = vmand %vm930, %vm983
          %vm1004 = vmand %vm931, %vm983
          %vm1005 = vmand %vm932, %vm983
          %vm1006 = vmand %vm933, %vm984
          %vm1007 = vmand %vm934, %vm984
          %vm1008 = vmand %vm935, %vm984
          %vm1009 = vmand %vm936, %vm985
          %vm1010 = vmand %vm937, %vm985
          %vm1011 = vmand %vm938, %vm985
          %vm1012 = vmand %vm939, %vm986
          %vm1013 = vmand %vm940, %vm986
          %vm1014 = vmand %vm941, %vm986
          %vm1015 = vmand %vm942, %vm987
          %vm1016 = vmand %vm943, %vm987
          %vm1017 = vmand %vm944, %vm987
          %vm1018 = vmand %vm945, %vm988
          %vm1019 = vmand %vm946, %vm988
          %vm1020 = vmand %vm947, %vm988
          %vm1021 = vmand %vm948, %vm989
          %vm1022 = vmand %vm949, %vm989
          %vm1023 = vmand %vm950, %vm989
          %vm1024 = vmand %vm951, %vm990
          %vm1025 = vmand %vm952, %vm990
          %vm1026 = vmand %vm953, %vm990
          %vm1027 = vmand %vm954, %vm991
          %vm1028 = vmand %vm955, %vm991
          %vm1029 = vmand %vm956, %vm991
          %vm1030 = vmand %vm957, %vm992
          %vm1031 = vmand %vm958, %vm992
          %vm1032 = vmand %vm959, %vm992
          %vm1033 = vmand %vm960, %vm993
          %vm1034 = vmand %vm961, %vm993
          %vm1035 = vmand %vm962, %vm993
          %vm1036 = vmand %vm963, %vm994
          %vm1037 = vmand %vm964, %vm994
          %vm1038 = vmand %vm965, %vm994
          %vm1039 = vmand %vm966, %vm995
          %vm1040 = vmand %vm967, %vm995
          %vm1041 = vmand %vm968, %vm995
          %vm1042 = vmand %vm969, %vm996
          %vm1043 = vmand %vm970, %vm996
          %vm1044 = vmand %vm971, %vm996
          %vm1045 = vmand %vm972, %vm997
          %vm1046 = vmand %vm973, %vm997
          %vm1047 = vmand %vm974, %vm997
          %vm1048 = vmand %vm975, %vm998
          %vm1049 = vmand %vm976, %vm998
          %vm1050 = vmand %vm977, %vm998
          %vm1051 = vmand %vm978, %vm999
          %vm1052 = vmand %vm979, %vm999
          %vm1053 = vmand %vm980, %vm999
          %v1054 = vsub.f32 %v298, %v352
          %v1055 = vsub.f32 %v299, %v353
          %v1056 = vsub.f32 %v300, %v354
          %v1057 = vsub.f32 %v301, %v355
          %v1058 = vsub.f32 %v302, %v356
          %v1059 = vsub.f32 %v303, %v357
          %v1060 = vsub.f32 %v304, %v358
          %v1061 = vsub.f32 %v305, %v359
          %v1062 = vsub.f32 %v306, %v360
          %v1063 = vsub.f32 %v307, %v361
          %v1064 = vsub.f32 %v308, %v362
          %v1065 = vsub.f32 %v309, %v363
          %v1066 = vsub.f32 %v310, %v364
          %v1067 = vsub.f32 %v311, %v365
          %v1068 = vsub.f32 %v312, %v366
          %v1069 = vsub.f32 %v313, %v367
          %v1070 = vsub.f32 %v314, %v368
          %v1071 = vsub.f32 %v315, %v369
          %v1072 = vsub.f32 %v316, %v370
          %v1073 = vsub.f32 %v317, %v371
          %v1074 = vsub.f32 %v318, %v372
          %v1075 = vsub.f32 %v319, %v373
          %v1076 = vsub.f32 %v320, %v374
          %v1077 = vsub.f32 %v321, %v375
          %v1078 = vsub.f32 %v322, %v376
          %v1079 = vsub.f32 %v323, %v377
          %v1080 = vsub.f32 %v324, %v378
          %v1081 = vsub.f32 %v325, %v379
          %v1082 = vsub.f32 %v326, %v380
          %v1083 = vsub.f32 %v327, %v381
          %v1084 = vsub.f32 %v328, %v382
          %v1085 = vsub.f32 %v329, %v383
          %v1086 = vsub.f32 %v330, %v384
          %v1087 = vsub.f32 %v331, %v385
          %v1088 = vsub.f32 %v332, %v386
          %v1089 = vsub.f32 %v333, %v387
          %v1090 = vsub.f32 %v334, %v388
          %v1091 = vsub.f32 %v335, %v389
          %v1092 = vsub.f32 %v336, %v390
          %v1093 = vsub.f32 %v337, %v391
          %v1094 = vsub.f32 %v338, %v392
          %v1095 = vsub.f32 %v339, %v393
          %v1096 = vsub.f32 %v340, %v394
          %v1097 = vsub.f32 %v341, %v395
          %v1098 = vsub.f32 %v342, %v396
          %v1099 = vsub.f32 %v343, %v397
          %v1100 = vsub.f32 %v344, %v398
          %v1101 = vsub.f32 %v345, %v399
          %v1102 = vsub.f32 %v346, %v400
          %v1103 = vsub.f32 %v347, %v401
          %v1104 = vsub.f32 %v348, %v402
          %v1105 = vsub.f32 %v349, %v403
          %v1106 = vsub.f32 %v350, %v404
          %v1107 = vsub.f32 %v351, %v405
          %v1108 = vmul.f32 %v1054, %v1054
          %v1109 = vmul.f32 %v1055, %v1055
          %v1110 = vmul.f32 %v1056, %v1056
          %v1111 = vmul.f32 %v1057, %v1057
          %v1112 = vmul.f32 %v1058, %v1058
          %v1113 = vmul.f32 %v1059, %v1059
          %v1114 = vmul.f32 %v1060, %v1060
          %v1115 = vmul.f32 %v1061, %v1061
          %v1116 = vmul.f32 %v1062, %v1062
          %v1117 = vmul.f32 %v1063, %v1063
          %v1118 = vmul.f32 %v1064, %v1064
          %v1119 = vmul.f32 %v1065, %v1065
          %v1120 = vmul.f32 %v1066, %v1066
          %v1121 = vmul.f32 %v1067, %v1067
          %v1122 = vmul.f32 %v1068, %v1068
          %v1123 = vmul.f32 %v1069, %v1069
          %v1124 = vmul.f32 %v1070, %v1070
          %v1125 = vmul.f32 %v1071, %v1071
          %v1126 = vmul.f32 %v1072, %v1072
          %v1127 = vmul.f32 %v1073, %v1073
          %v1128 = vmul.f32 %v1074, %v1074
          %v1129 = vmul.f32 %v1075, %v1075
          %v1130 = vmul.f32 %v1076, %v1076
          %v1131 = vmul.f32 %v1077, %v1077
          %v1132 = vmul.f32 %v1078, %v1078
          %v1133 = vmul.f32 %v1079, %v1079
          %v1134 = vmul.f32 %v1080, %v1080
          %v1135 = vmul.f32 %v1081, %v1081
          %v1136 = vmul.f32 %v1082, %v1082
          %v1137 = vmul.f32 %v1083, %v1083
          %v1138 = vmul.f32 %v1084, %v1084
          %v1139 = vmul.f32 %v1085, %v1085
          %v1140 = vmul.f32 %v1086, %v1086
          %v1141 = vmul.f32 %v1087, %v1087
          %v1142 = vmul.f32 %v1088, %v1088
          %v1143 = vmul.f32 %v1089, %v1089
          %v1144 = vmul.f32 %v1090, %v1090
          %v1145 = vmul.f32 %v1091, %v1091
          %v1146 = vmul.f32 %v1092, %v1092
          %v1147 = vmul.f32 %v1093, %v1093
          %v1148 = vmul.f32 %v1094, %v1094
          %v1149 = vmul.f32 %v1095, %v1095
          %v1150 = vmul.f32 %v1096, %v1096
          %v1151 = vmul.f32 %v1097, %v1097
          %v1152 = vmul.f32 %v1098, %v1098
          %v1153 = vmul.f32 %v1099, %v1099
          %v1154 = vmul.f32 %v1100, %v1100
          %v1155 = vmul.f32 %v1101, %v1101
          %v1156 = vmul.f32 %v1102, %v1102
          %v1157 = vmul.f32 %v1103, %v1103
          %v1158 = vmul.f32 %v1104, %v1104
          %v1159 = vmul.f32 %v1105, %v1105
          %v1160 = vmul.f32 %v1106, %v1106
          %v1161 = vmul.f32 %v1107, %v1107
          %v1162 = vsel %vm1000, %v1108, 0.0
          %v1163 = vsel %vm1001, %v1109, 0.0
          %v1164 = vsel %vm1002, %v1110, 0.0
          %v1165 = vsel %vm1003, %v1111, 0.0
          %v1166 = vsel %vm1004, %v1112, 0.0
          %v1167 = vsel %vm1005, %v1113, 0.0
          %v1168 = vsel %vm1006, %v1114, 0.0
          %v1169 = vsel %vm1007, %v1115, 0.0
          %v1170 = vsel %vm1008, %v1116, 0.0
          %v1171 = vsel %vm1009, %v1117, 0.0
          %v1172 = vsel %vm1010, %v1118, 0.0
          %v1173 = vsel %vm1011, %v1119, 0.0
          %v1174 = vsel %vm1012, %v1120, 0.0
          %v1175 = vsel %vm1013, %v1121, 0.0
          %v1176 = vsel %vm1014, %v1122, 0.0
          %v1177 = vsel %vm1015, %v1123, 0.0
          %v1178 = vsel %vm1016, %v1124, 0.0
          %v1179 = vsel %vm1017, %v1125, 0.0
          %v1180 = vsel %vm1018, %v1126, 0.0
          %v1181 = vsel %vm1019, %v1127, 0.0
          %v1182 = vsel %vm1020, %v1128, 0.0
          %v1183 = vsel %vm1021, %v1129, 0.0
          %v1184 = vsel %vm1022, %v1130, 0.0
          %v1185 = vsel %vm1023, %v1131, 0.0
          %v1186 = vsel %vm1024, %v1132, 0.0
          %v1187 = vsel %vm1025, %v1133, 0.0
          %v1188 = vsel %vm1026, %v1134, 0.0
          %v1189 = vsel %vm1027, %v1135, 0.0
          %v1190 = vsel %vm1028, %v1136, 0.0
          %v1191 = vsel %vm1029, %v1137, 0.0
          %v1192 = vsel %vm1030, %v1138, 0.0
          %v1193 = vsel %vm1031, %v1139, 0.0
          %v1194 = vsel %vm1032, %v1140, 0.0
          %v1195 = vsel %vm1033, %v1141, 0.0
          %v1196 = vsel %vm1034, %v1142, 0.0
          %v1197 = vsel %vm1035, %v1143, 0.0
          %v1198 = vsel %vm1036, %v1144, 0.0
          %v1199 = vsel %vm1037, %v1145, 0.0
          %v1200 = vsel %vm1038, %v1146, 0.0
          %v1201 = vsel %vm1039, %v1147, 0.0
          %v1202 = vsel %vm1040, %v1148, 0.0
          %v1203 = vsel %vm1041, %v1149, 0.0
          %v1204 = vsel %vm1042, %v1150, 0.0
          %v1205 = vsel %vm1043, %v1151, 0.0
          %v1206 = vsel %vm1044, %v1152, 0.0
          %v1207 = vsel %vm1045, %v1153, 0.0
          %v1208 = vsel %vm1046, %v1154, 0.0
          %v1209 = vsel %vm1047, %v1155, 0.0
          %v1210 = vsel %vm1048, %v1156, 0.0
          %v1211 = vsel %vm1049, %v1157, 0.0
          %v1212 = vsel %vm1050, %v1158, 0.0
          %v1213 = vsel %vm1051, %v1159, 0.0
          %v1214 = vsel %vm1052, %v1160, 0.0
          %v1215 = vsel %vm1053, %v1161, 0.0
          %v1216 = vsel %vm1000, 1, 0
          %v1217 = vsel %vm1001, 1, 0
          %v1218 = vsel %vm1002, 1, 0
          %v1219 = vsel %vm1003, 1, 0
          %v1220 = vsel %vm1004, 1, 0
          %v1221 = vsel %vm1005, 1, 0
          %v1222 = vsel %vm1006, 1, 0
          %v1223 = vsel %vm1007, 1, 0
          %v1224 = vsel %vm1008, 1, 0
          %v1225 = vsel %vm1009, 1, 0
          %v1226 = vsel %vm1010, 1, 0
          %v1227 = vsel %vm1011, 1, 0
          %v1228 = vsel %vm1012, 1, 0
          %v1229 = vsel %vm1013, 1, 0
          %v1230 = vsel %vm1014, 1, 0
          %v1231 = vsel %vm1015, 1, 0
          %v1232 = vsel %vm1016, 1, 0
          %v1233 = vsel %vm1017, 1, 0
          %v1234 = vsel %vm1018, 1, 0
          %v1235 = vsel %vm1019, 1, 0
          %v1236 = vsel %vm1020, 1, 0
          %v1237 = vsel %vm1021, 1, 0
          %v1238 = vsel %vm1022, 1, 0
          %v1239 = vsel %vm1023, 1, 0
          %v1240 = vsel %vm1024, 1, 0
          %v1241 = vsel %vm1025, 1, 0
          %v1242 = vsel %vm1026, 1, 0
          %v1243 = vsel %vm1027, 1, 0
          %v1244 = vsel %vm1028, 1, 0
          %v1245 = vsel %vm1029, 1, 0
          %v1246 = vsel %vm1030, 1, 0
          %v1247 = vsel %vm1031, 1, 0
          %v1248 = vsel %vm1032, 1, 0
          %v1249 = vsel %vm1033, 1, 0
          %v1250 = vsel %vm1034, 1, 0
          %v1251 = vsel %vm1035, 1, 0
          %v1252 = vsel %vm1036, 1, 0
          %v1253 = vsel %vm1037, 1, 0
          %v1254 = vsel %vm1038, 1, 0
          %v1255 = vsel %vm1039, 1, 0
          %v1256 = vsel %vm1040, 1, 0
          %v1257 = vsel %vm1041, 1, 0
          %v1258 = vsel %vm1042, 1, 0
          %v1259 = vsel %vm1043, 1, 0
          %v1260 = vsel %vm1044, 1, 0
          %v1261 = vsel %vm1045, 1, 0
          %v1262 = vsel %vm1046, 1, 0
          %v1263 = vsel %vm1047, 1, 0
          %v1264 = vsel %vm1048, 1, 0
          %v1265 = vsel %vm1049, 1, 0
          %v1266 = vsel %vm1050, 1, 0
          %v1267 = vsel %vm1051, 1, 0
          %v1268 = vsel %vm1052, 1, 0
          %v1269 = vsel %vm1053, 1, 0
          %v1270 = vcvt.s32.f32 %v1216
          %v1271 = vcvt.s32.f32 %v1217
          %v1272 = vcvt.s32.f32 %v1218
          %v1273 = vcvt.s32.f32 %v1219
          %v1274 = vcvt.s32.f32 %v1220
          %v1275 = vcvt.s32.f32 %v1221
          %v1276 = vcvt.s32.f32 %v1222
          %v1277 = vcvt.s32.f32 %v1223
          %v1278 = vcvt.s32.f32 %v1224
          %v1279 = vcvt.s32.f32 %v1225
          %v1280 = vcvt.s32.f32 %v1226
          %v1281 = vcvt.s32.f32 %v1227
          %v1282 = vcvt.s32.f32 %v1228
          %v1283 = vcvt.s32.f32 %v1229
          %v1284 = vcvt.s32.f32 %v1230
          %v1285 = vcvt.s32.f32 %v1231
          %v1286 = vcvt.s32.f32 %v1232
          %v1287 = vcvt.s32.f32 %v1233
          %v1288 = vcvt.s32.f32 %v1234
          %v1289 = vcvt.s32.f32 %v1235
          %v1290 = vcvt.s32.f32 %v1236
          %v1291 = vcvt.s32.f32 %v1237
          %v1292 = vcvt.s32.f32 %v1238
          %v1293 = vcvt.s32.f32 %v1239
          %v1294 = vcvt.s32.f32 %v1240
          %v1295 = vcvt.s32.f32 %v1241
          %v1296 = vcvt.s32.f32 %v1242
          %v1297 = vcvt.s32.f32 %v1243
          %v1298 = vcvt.s32.f32 %v1244
          %v1299 = vcvt.s32.f32 %v1245
          %v1300 = vcvt.s32.f32 %v1246
          %v1301 = vcvt.s32.f32 %v1247
          %v1302 = vcvt.s32.f32 %v1248
          %v1303 = vcvt.s32.f32 %v1249
          %v1304 = vcvt.s32.f32 %v1250
          %v1305 = vcvt.s32.f32 %v1251
          %v1306 = vcvt.s32.f32 %v1252
          %v1307 = vcvt.s32.f32 %v1253
          %v1308 = vcvt.s32.f32 %v1254
          %v1309 = vcvt.s32.f32 %v1255
          %v1310 = vcvt.s32.f32 %v1256
          %v1311 = vcvt.s32.f32 %v1257
          %v1312 = vcvt.s32.f32 %v1258
          %v1313 = vcvt.s32.f32 %v1259
          %v1314 = vcvt.s32.f32 %v1260
          %v1315 = vcvt.s32.f32 %v1261
          %v1316 = vcvt.s32.f32 %v1262
          %v1317 = vcvt.s32.f32 %v1263
          %v1318 = vcvt.s32.f32 %v1264
          %v1319 = vcvt.s32.f32 %v1265
          %v1320 = vcvt.s32.f32 %v1266
          %v1321 = vcvt.s32.f32 %v1267
          %v1322 = vcvt.s32.f32 %v1268
          %v1323 = vcvt.s32.f32 %v1269
          %v1324 = vld [vmem:[#allocation7] sm:$0x7]
          %v1325 = vadd.f32 %v1162, %v1165
          %v1326 = vadd.f32 %v1325, %v1168
          %v1327 = vadd.f32 %v1326, %v1171
          %v1328 = vadd.f32 %v1327, %v1174
          %v1329 = vadd.f32 %v1328, %v1177
          %v1330 = vadd.f32 %v1329, %v1180
          %v1331 = vadd.f32 %v1330, %v1183
          %v1332 = vadd.f32 %v1331, %v1186
          %v1333 = vadd.f32 %v1332, %v1189
          %v1334 = vadd.f32 %v1333, %v1192
          %v1335 = vadd.f32 %v1334, %v1195
          %v1336 = vadd.f32 %v1335, %v1198
          %v1337 = vadd.f32 %v1336, %v1201
          %v1338 = vadd.f32 %v1337, %v1204
          %v1339 = vadd.f32 %v1338, %v1207
          %v1340 = vadd.f32 %v1339, %v1210
          %v1341 = vadd.f32 %v1340, %v1213
          %v1342 = vrot.slane %v1341, 4
          %v1343 = vadd.f32 %v1341, %v1342
          %v1344 = vrot.slane %v1343, 2
          %v1345 = vadd.f32 %v1343, %v1344
          %v1346 = vrot.slane %v1345, 1
          %v1347 = vadd.f32 %v1345, %v1346
          %v1348 = vadd.f32 %v1163, %v1166
          %v1349 = vadd.f32 %v1348, %v1169
          %v1350 = vadd.f32 %v1349, %v1172
          %v1351 = vadd.f32 %v1350, %v1175
          %v1352 = vadd.f32 %v1351, %v1178
          %v1353 = vadd.f32 %v1352, %v1181
          %v1354 = vadd.f32 %v1353, %v1184
          %v1355 = vadd.f32 %v1354, %v1187
          %v1356 = vadd.f32 %v1355, %v1190
          %v1357 = vadd.f32 %v1356, %v1193
          %v1358 = vadd.f32 %v1357, %v1196
          %v1359 = vadd.f32 %v1358, %v1199
          %v1360 = vadd.f32 %v1359, %v1202
          %v1361 = vadd.f32 %v1360, %v1205
          %v1362 = vadd.f32 %v1361, %v1208
          %v1363 = vadd.f32 %v1362, %v1211
          %v1364 = vadd.f32 %v1363, %v1214
          %v1365 = vrot.slane %v1364, 4
          %v1366 = vadd.f32 %v1364, %v1365
          %v1367 = vrot.slane %v1366, 2
          %v1368 = vadd.f32 %v1366, %v1367
          %v1369 = vrot.slane %v1368, 1
          %v1370 = vadd.f32 %v1368, %v1369
          %v1371 = vadd.f32 %v1164, %v1167
          %v1372 = vadd.f32 %v1371, %v1170
          %v1373 = vadd.f32 %v1372, %v1173
          %v1374 = vadd.f32 %v1373, %v1176
          %v1375 = vadd.f32 %v1374, %v1179
          %v1376 = vadd.f32 %v1375, %v1182
          %v1377 = vadd.f32 %v1376, %v1185
          %v1378 = vadd.f32 %v1377, %v1188
          %v1379 = vadd.f32 %v1378, %v1191
          %v1380 = vadd.f32 %v1379, %v1194
          %v1381 = vadd.f32 %v1380, %v1197
          %v1382 = vadd.f32 %v1381, %v1200
          %v1383 = vadd.f32 %v1382, %v1203
          %v1384 = vadd.f32 %v1383, %v1206
          %v1385 = vadd.f32 %v1384, %v1209
          %v1386 = vadd.f32 %v1385, %v1212
          %v1387 = vadd.f32 %v1386, %v1215
          %v1388 = vrot.slane %v1387, 4
          %v1389 = vadd.f32 %v1387, %v1388
          %v1390 = vrot.slane %v1389, 2
          %v1391 = vadd.f32 %v1389, %v1390
          %v1392 = vrot.slane %v1391, 1
          %v1393 = vadd.f32 %v1391, %v1392
          %v1397 = vrot.slane %v1370, 7
          %v1398 = vrot.slane %v1393, 6
          %vm1399 = vcmask 1040384
          %v1400 = vsel %vm1399, %v1347, %v1397
          %vm1401 = vcmask 1041408
          %v1402 = vsel %vm1401, %v1400, %v1398
          %v1404 = vadd.f32 %v1324, %v1402
          %v1405 = vlaneseq
          %vm1406 = vcmp.ge.s32.totalorder %v1405, 0
          %vm1407 = vcmp.lt.s32.totalorder %v1405, 384
          %vm1408 = vmand %vm1406, %vm1407
          %1409 = vst.msk [vmem:[#allocation7] sm:$0x7] %vm1408, %v1404
          %v1410 = vld [vmem:[#allocation8] sm:$0x7]
          %v1411 = vadd.f32 %v1270, %v1273
          %v1412 = vadd.f32 %v1411, %v1276
          %v1413 = vadd.f32 %v1412, %v1279
          %v1414 = vadd.f32 %v1413, %v1282
          %v1415 = vadd.f32 %v1414, %v1285
          %v1416 = vadd.f32 %v1415, %v1288
          %v1417 = vadd.f32 %v1416, %v1291
          %v1418 = vadd.f32 %v1417, %v1294
          %v1419 = vadd.f32 %v1418, %v1297
          %v1420 = vadd.f32 %v1419, %v1300
          %v1421 = vadd.f32 %v1420, %v1303
          %v1422 = vadd.f32 %v1421, %v1306
          %v1423 = vadd.f32 %v1422, %v1309
          %v1424 = vadd.f32 %v1423, %v1312
          %v1425 = vadd.f32 %v1424, %v1315
          %v1426 = vadd.f32 %v1425, %v1318
          %v1427 = vadd.f32 %v1426, %v1321
          %v1428 = vrot.slane %v1427, 4
          %v1429 = vadd.f32 %v1427, %v1428
          %v1430 = vrot.slane %v1429, 2
          %v1431 = vadd.f32 %v1429, %v1430
          %v1432 = vrot.slane %v1431, 1
          %v1433 = vadd.f32 %v1431, %v1432
          %v1434 = vadd.f32 %v1271, %v1274
          %v1435 = vadd.f32 %v1434, %v1277
          %v1436 = vadd.f32 %v1435, %v1280
          %v1437 = vadd.f32 %v1436, %v1283
          %v1438 = vadd.f32 %v1437, %v1286
          %v1439 = vadd.f32 %v1438, %v1289
          %v1440 = vadd.f32 %v1439, %v1292
          %v1441 = vadd.f32 %v1440, %v1295
          %v1442 = vadd.f32 %v1441, %v1298
          %v1443 = vadd.f32 %v1442, %v1301
          %v1444 = vadd.f32 %v1443, %v1304
          %v1445 = vadd.f32 %v1444, %v1307
          %v1446 = vadd.f32 %v1445, %v1310
          %v1447 = vadd.f32 %v1446, %v1313
          %v1448 = vadd.f32 %v1447, %v1316
          %v1449 = vadd.f32 %v1448, %v1319
          %v1450 = vadd.f32 %v1449, %v1322
          %v1451 = vrot.slane %v1450, 4
          %v1452 = vadd.f32 %v1450, %v1451
          %v1453 = vrot.slane %v1452, 2
          %v1454 = vadd.f32 %v1452, %v1453
          %v1455 = vrot.slane %v1454, 1
          %v1456 = vadd.f32 %v1454, %v1455
          %v1457 = vadd.f32 %v1272, %v1275
          %v1458 = vadd.f32 %v1457, %v1278
          %v1459 = vadd.f32 %v1458, %v1281
          %v1460 = vadd.f32 %v1459, %v1284
          %v1461 = vadd.f32 %v1460, %v1287
          %v1462 = vadd.f32 %v1461, %v1290
          %v1463 = vadd.f32 %v1462, %v1293
          %v1464 = vadd.f32 %v1463, %v1296
          %v1465 = vadd.f32 %v1464, %v1299
          %v1466 = vadd.f32 %v1465, %v1302
          %v1467 = vadd.f32 %v1466, %v1305
          %v1468 = vadd.f32 %v1467, %v1308
          %v1469 = vadd.f32 %v1468, %v1311
          %v1470 = vadd.f32 %v1469, %v1314
          %v1471 = vadd.f32 %v1470, %v1317
          %v1472 = vadd.f32 %v1471, %v1320
          %v1473 = vadd.f32 %v1472, %v1323
          %v1474 = vrot.slane %v1473, 4
          %v1475 = vadd.f32 %v1473, %v1474
          %v1476 = vrot.slane %v1475, 2
          %v1477 = vadd.f32 %v1475, %v1476
          %v1478 = vrot.slane %v1477, 1
          %v1479 = vadd.f32 %v1477, %v1478
          %v1483 = vrot.slane %v1456, 7
          %v1484 = vrot.slane %v1479, 6
          %v1485 = vsel %vm1399, %v1433, %v1483
          %v1486 = vsel %vm1401, %v1485, %v1484
          %v1488 = vadd.f32 %v1410, %v1486
          %1489 = vst.msk [vmem:[#allocation8] sm:$0x7] %vm1408, %v1488
        $region48: #{tpu_custom_call.1} parent=27 // pred_fallthru
          _
        // Predicated region
        $region49: #{tpu_custom_call.1} parent=27 // pred_check
          %p1490 = pneg %p113
        $region50: #{tpu_custom_call.1} parent=27 // pred_check_branch
          %1492 = sbr.rel (%p1490) target = $region52
        $region51: #{tpu_custom_call.1} parent=27 // pred_region
          %1494 = vsyncadd [#allocation4], 0
          %s1495 = smul.addr %s27, 3
          %s1496 = scalar_lea.hbm %s2, %s1495
          %s1498 = sshll.u32 [#allocation7], 4
          %s1499 = int_to_ptr.vmem [resolvable:$true] %s1498
          %s1500 = sshll.u32 %s1496, 4
          %s1501 = int_to_ptr.hbm [resolvable:$true] %s1500
          %1503 = dma.vmem_to_hbm [thread:$0]  %s1499, 48, %s1501, [#allocation4]
        $region52: #{tpu_custom_call.1} parent=27 // pred_fallthru
          _
        // Predicated region
        $region53: #{tpu_custom_call.1} parent=27 // pred_check
          %p1504 = pneg %p139
        $region54: #{tpu_custom_call.1} parent=27 // pred_check_branch
          %1506 = sbr.rel (%p1504) target = $region56
        $region55: #{tpu_custom_call.1} parent=27 // pred_region
          %1508 = vsyncadd [#allocation9], 0
          %s1509 = smul.addr %s27, 3
          %s1510 = scalar_lea.hbm %s3, %s1509
          %s1512 = sshll.u32 [#allocation8], 4
          %s1513 = int_to_ptr.vmem [resolvable:$true] %s1512
          %s1514 = sshll.u32 %s1510, 4
          %s1515 = int_to_ptr.hbm [resolvable:$true] %s1514
          %1517 = dma.vmem_to_hbm [thread:$0]  %s1513, 48, %s1515, [#allocation9]
        $region56: #{tpu_custom_call.1} parent=27 // pred_fallthru
          _
        // Predicated region
        $region57: #{tpu_custom_call.1} parent=27 // pred_check
          %p1518 = pneg %p113
        $region58: #{tpu_custom_call.1} parent=27 // pred_check_branch
          %1520 = sbr.rel (%p1518) target = $region60
        $region59: #{tpu_custom_call.1} parent=27 // pred_region
          %1522 = dma.done [#allocation4], 48
        $region60: #{tpu_custom_call.1} parent=27 // pred_fallthru
          _
        // Predicated region
        $region61: #{tpu_custom_call.1} parent=27 // pred_check
          %p1523 = pneg %p139
        $region62: #{tpu_custom_call.1} parent=27 // pred_check_branch
          %1525 = sbr.rel (%p1523) target = $region64
        $region63: #{tpu_custom_call.1} parent=27 // pred_region
          %1527 = dma.done [#allocation9], 48
        $region64: #{tpu_custom_call.1} parent=27 // pred_fallthru
          _
      $region28: #{tpu_custom_call.1} parent=5 // pred_fallthru
        _
      %p1528 = scmp.le.s32.totalorder 2, %s18
      // Predicated region
      $region65: #{tpu_custom_call.1} parent=5 // pred_check
        %p1529 = pneg %p1528
      $region66: #{tpu_custom_call.1} parent=5 // pred_check_branch
        %1531 = sbr.rel (%p1529) target = $region68
      $region67: #{tpu_custom_call.1} parent=5 // pred_region
        %s1532 = ssub.s32 %s18, 2
      $region68: #{tpu_custom_call.1} parent=5 // pred_fallthru
        _
    $region6: #{tpu_custom_call.1} parent=1 // loop_footer
      %s22 = sadd.s32 1, %s18
    $region7: #{tpu_custom_call.1} parent=1 // loop_footer_branch
      %17 = sbr.rel target = $region3
    $region8: #{tpu_custom_call.1} parent=1 // loop_exit
      _
    %1533 = vsyncpa [#allocation3], 1
    %s1534 = scalar_lea.sflag [#allocation3], 1
    %1535 = vsyncpa %s1534, 1
    %1536 = vsyncpa [#allocation6], 1
    %s1537 = scalar_lea.sflag [#allocation6], 1
    %1538 = vsyncpa %s1537, 1
    %1539 = vsyncpa [#allocation4], 1
    %s1540 = scalar_lea.sflag [#allocation4], 1
    %1541 = vsyncpa %s1540, 1
    %1542 = vsyncpa [#allocation9], 1

</llo_original>
